<compile_context>
chip_gen: v7x
topology: tpu7x:2x2x1
jax: 0.10.0
libtpu: 0.0.40
codegen_flags: <defaults>
</compile_context>

<pallas_src>
import functools

import jax
import jax.numpy as jnp
from jax import lax
from jax.experimental import pallas as pl
from jax.experimental.pallas import tpu as pltpu


# ----------------------------------------------------------------------------- kernel
def _fusion_kernel(rgns_ref, pooled_ref, lens_ref,
                   wi1_ref, bi1_ref, wi2_ref, bi2_ref,
                   we_ref, be_ref, ln_g_ref, ln_b_ref,
                   ws1_ref, bs1_ref, ws2_ref, bs2_ref,
                   wsc_ref, bsc_ref, wf_ref, bf_ref,
                   out_ref):
    Bt, Rp, D = out_ref.shape
    rows = Bt * Rp
    f32 = jnp.float32
    dot = functools.partial(jnp.dot, preferred_element_type=jnp.float32)

    # --- image branch: rgns = MLP_image(rgns) + rgns  (all Bt*Rp rows in one 2-D MXU pass) ----
    # Rp is a multiple of 8, so (Bt, Rp, D) <-> (Bt*Rp, D) reshapes are sublane-tile aligned.
    rg3 = rgns_ref[...].astype(f32)                                    # (Bt, Rp, D)
    rg = rg3.reshape(rows, D)
    h = jnp.maximum(dot(rg, wi1_ref[...]) + bi1_ref[...], 0.0)         # (rows, H)
    rg = dot(h, wi2_ref[...]) + bi2_ref[...] + rg                      # (rows, D)

    # --- seg branch: Linear(133,D) -> ReLU -> Dropout(eval: id) -> LayerNorm -> MLP_seg + res -
    pooled = pooled_ref[...].astype(f32)                               # (Bt, 133)
    q = jnp.maximum(dot(pooled, we_ref[...]) + be_ref[...], 0.0)       # (Bt, D)
    mu = jnp.mean(q, axis=-1, keepdims=True)
    var = jnp.mean((q - mu) ** 2, axis=-1, keepdims=True)
    q = (q - mu) * lax.rsqrt(var + 1e-5) * ln_g_ref[...] + ln_b_ref[...]   # LayerNorm eps=1e-5
    hq = jnp.maximum(dot(q, ws1_ref[...]) + bs1_ref[...], 0.0)
    q = dot(hq, ws2_ref[...]) + bs2_ref[...] + q                       # (Bt, D)

    # --- func_attention (sigmoid gate, masked); q broadcast over regions is a sublane bcast ---
    rg3 = rg.reshape(Bt, Rp, D)
    q3 = q[:, None, :]                                                 # (Bt, 1, D)
    lens = lens_ref[...]                                               # (Bt, 1, 1) int32
    r_idx = lax.broadcasted_iota(jnp.int32, (Bt, Rp, 1), 1)
    mask = (r_idx < lens).astype(f32)                                  # (Bt, Rp, 1)

    inv_sqrt_d = 1.0 / float(D) ** 0.5
    attn = jnp.sum(rg3 * q3, axis=-1, keepdims=True) * inv_sqrt_d      # (Bt, Rp, 1)
    attn = jax.nn.sigmoid(attn) * mask      # masked_fill(-inf) + sigmoid == sigmoid * mask
    wei3 = attn * rg3                                                  # weightedContext

    # --- refine: tanh(fc_scale(wei)) gating + masked seg repeat + relu(fc_1(...)) -------------
    wei = wei3.reshape(rows, D)
    seg_rep = (q3 * mask).reshape(rows, D)                             # seg.repeat * mask
    scaling = jnp.tanh(dot(wei, wsc_ref[...]) + bsc_ref[...])
    modu = jnp.maximum(dot(wei * scaling + seg_rep, wf_ref[...]) + bf_ref[...], 0.0)
    out_ref[...] = modu.reshape(Bt, Rp, D).astype(out_ref.dtype)


# ----------------------------------------------------------------------------- wrapper
_WEIGHT_ORDER = ("wi1", "bi1", "wi2", "bi2", "we", "be", "ln_g", "ln_b",
                 "ws1", "bs1", "ws2", "bs2", "wsc", "bsc", "wf", "bf")


def crossmodal_fusion(rgns, unet_segs, region_lens, params, *,
                      batch_tile=128, max_rows_per_step=4096):
    B, R, D = rgns.shape
    _, C, Hs, Ws = unet_segs.shape
    assert C == 133, "embed_seg_HW expects 133 pooled features"
    assert Hs == 7 and Ws == 7, "AvgPool2d(7) modeled as global spatial mean (7x7 input)"
    f32 = jnp.float32

    # AvgPool2d(7) + View hoisted out of the kernel (per-step seg DMA shrinks to (Bt, 133)).
    pooled = unet_segs.reshape(B, C, Hs * Ws).mean(axis=-1).astype(f32)          # (B, 133)

    # Region axis padded to a sublane multiple (keeps in-kernel reshapes tile-aligned);
    # batch padded to a multiple of the batch tile.
    Rp = pl.cdiv(R, 8) * 8
    batch_tile = max(8, (batch_tile // 8) * 8)
    B8 = pl.cdiv(B, 8) * 8
    rows_cap = max(8, ((max_rows_per_step // Rp) // 8) * 8)     # lane-padding-aware VMEM cap
    Bt = min(batch_tile, B8, rows_cap)
    if B8 > 8 and B8 // Bt < 2:                                 # give v7x megacore >= 2 steps
        Bt = max(8, ((B8 // 2) // 8) * 8)
    Bp = pl.cdiv(B8, Bt) * Bt

    rgns_p = jnp.pad(rgns.astype(f32), ((0, Bp - B), (0, Rp - R), (0, 0)))       # (Bp, Rp, D)
    pooled_p = jnp.pad(pooled, ((0, Bp - B), (0, 0)))                            # (Bp, 133)
    lens_p = jnp.pad(region_lens.astype(jnp.int32), (0, Bp - B)).reshape(Bp, 1, 1)

    weights = [params[k].astype(f32) for k in _WEIGHT_ORDER]

    grid_spec = pl.GridSpec(
        grid=(Bp // Bt,),
        in_specs=[
            pl.BlockSpec((Bt, Rp, D), lambda i: (i, 0, 0)),      # regions
            pl.BlockSpec((Bt, C), lambda i: (i, 0)),             # pooled seg features
            pl.BlockSpec((Bt, 1, 1), lambda i: (i, 0, 0)),       # region lengths
        ] + [pl.BlockSpec(w.shape, lambda i: (0, 0)) for w in weights],
        out_specs=pl.BlockSpec((Bt, Rp, D), lambda i: (i, 0, 0)),
    )

    out = pl.pallas_call(
        _fusion_kernel,
        out_shape=jax.ShapeDtypeStruct((Bp, Rp, D), jnp.float32),
        grid_spec=grid_spec,
        compiler_params=pltpu.CompilerParams(dimension_semantics=("parallel",)),
    )(rgns_p, pooled_p, lens_p, *weights)

    return out[:B, :R]


# ----------------------------------------------------------------------------- pure-JAX reference
def reference(rgns, unet_segs, region_lens, p):
    def mlp(x, w1, b1, w2, b2):
        return jnp.maximum(x @ w1 + b1, 0.0) @ w2 + b2

    rg = mlp(rgns, p["wi1"], p["bi1"][0], p["wi2"], p["bi2"][0]) + rgns
    B, C, H, W = unet_segs.shape
    pooled = unet_segs.reshape(B, C, H * W).mean(-1)                     # AvgPool2d(7) + View
    q = jnp.maximum(pooled @ p["we"] + p["be"][0], 0.0)
    mu = q.mean(-1, keepdims=True)
    var = ((q - mu) ** 2).mean(-1, keepdims=True)
    q = (q - mu) / jnp.sqrt(var + 1e-5) * p["ln_g"][0] + p["ln_b"][0]
    q = q[:, None, :]
    q = mlp(q, p["ws1"], p["bs1"][0], p["ws2"], p["bs2"][0]) + q         # (B,1,D)

    R, D = rg.shape[1], rg.shape[2]
    mask = jnp.arange(R)[None, :] < region_lens[:, None]                 # (B,R)
    attn = jnp.squeeze(rg @ jnp.transpose(q, (0, 2, 1)), -1) / jnp.sqrt(float(D))
    attn = jnp.where(mask, jax.nn.sigmoid(attn), 0.0)
    wei = attn[..., None] * rg
    scaling = jnp.tanh(wei @ p["wsc"] + p["bsc"][0])
    seg_rep = q * mask[..., None].astype(jnp.float32)
    return jnp.maximum((wei * scaling + seg_rep) @ p["wf"] + p["bf"][0], 0.0)


# ----------------------------------------------------------------------------- main
if __name__ == "__main__":
    B, R, D = 2, 8, 32            # batch, regions, embed_size
    C, H, W = 133, 7, 7           # Unet_segs channels / spatial (fixed by Linear(133, D))

    key = jax.random.PRNGKey(0)
    ks = jax.random.split(key, 24)

    def w(k, shape, scale=0.1):
        return (scale * jax.random.normal(k, shape)).astype(jnp.float32)

    params = {
        # MLP_image: Linear(D, D//2) -> ReLU -> Linear(D//2, D)
        "wi1": w(ks[0], (D, D // 2)), "bi1": w(ks[1], (1, D // 2)),
        "wi2": w(ks[2], (D // 2, D)), "bi2": w(ks[3], (1, D)),
        # embed_seg_HW: Linear(133, D), LayerNorm(D)
        "we": w(ks[4], (C, D)), "be": w(ks[5], (1, D)),
        "ln_g": jnp.ones((1, D), jnp.float32), "ln_b": jnp.zeros((1, D), jnp.float32),
        # MLP_seg
        "ws1": w(ks[6], (D, D // 2)), "bs1": w(ks[7], (1, D // 2)),
        "ws2": w(ks[8], (D // 2, D)), "bs2": w(ks[9], (1, D)),
        # fc_scale, fc_1
        "wsc": w(ks[10], (D, D)), "bsc": w(ks[11], (1, D)),
        "wf": w(ks[12], (D, D)), "bf": w(ks[13], (1, D)),
    }

    rgns = jax.random.normal(ks[14], (B, R, D), jnp.float32)
    unet_segs = jax.random.normal(ks[15], (B, C, H, W), jnp.float32)
    region_lens = jnp.array([5, 8], dtype=jnp.int32)

    out = crossmodal_fusion(rgns, unet_segs, region_lens, params)
    out = jax.block_until_ready(out)

    ref = reference(rgns, unet_segs, region_lens, params)
    assert out.shape == (B, R, D)
    assert jnp.allclose(out, ref, rtol=1e-4, atol=1e-4), (
        f"max abs err {jnp.max(jnp.abs(out - ref))}")

    print("KERNEL_OK")
</pallas_src>

<mosaic_0001>
module attributes {stable_mosaic.version = 11 : i64} {
  func.func @_fusion_kernel(%arg0: i32, %arg1: memref<8x8x32xf32, #tpu.memory_space<vmem>>, %arg2: memref<8x133xf32, #tpu.memory_space<vmem>>, %arg3: memref<8x1x1xi32, #tpu.memory_space<vmem>>, %arg4: memref<32x16xf32, #tpu.memory_space<vmem>>, %arg5: memref<1x16xf32, #tpu.memory_space<vmem>>, %arg6: memref<16x32xf32, #tpu.memory_space<vmem>>, %arg7: memref<1x32xf32, #tpu.memory_space<vmem>>, %arg8: memref<133x32xf32, #tpu.memory_space<vmem>>, %arg9: memref<1x32xf32, #tpu.memory_space<vmem>>, %arg10: memref<1x32xf32, #tpu.memory_space<vmem>>, %arg11: memref<1x32xf32, #tpu.memory_space<vmem>>, %arg12: memref<32x16xf32, #tpu.memory_space<vmem>>, %arg13: memref<1x16xf32, #tpu.memory_space<vmem>>, %arg14: memref<16x32xf32, #tpu.memory_space<vmem>>, %arg15: memref<1x32xf32, #tpu.memory_space<vmem>>, %arg16: memref<32x32xf32, #tpu.memory_space<vmem>>, %arg17: memref<1x32xf32, #tpu.memory_space<vmem>>, %arg18: memref<32x32xf32, #tpu.memory_space<vmem>>, %arg19: memref<1x32xf32, #tpu.memory_space<vmem>>, %arg20: memref<8x8x32xf32, #tpu.memory_space<vmem>>) attributes {dimension_semantics = [#tpu.dimension_semantics<parallel>], iteration_bounds = array<i64: 1>, scalar_prefetch = 0 : i64, scratch_operands = 0 : i64, tpu.core_type = #tpu.core_type<tc>, window_params = [{transform_indices = @transform_0, window_bounds = array<i64: 8, 8, 32>}, {transform_indices = @transform_1, window_bounds = array<i64: 8, 133>}, {transform_indices = @transform_2, window_bounds = array<i64: 8, 1, 1>}, {pipeline_mode = #tpu.pipeline_mode<synchronous>, transform_indices = @transform_3, window_bounds = array<i64: 32, 16>}, {pipeline_mode = #tpu.pipeline_mode<synchronous>, transform_indices = @transform_4, window_bounds = array<i64: 1, 16>}, {pipeline_mode = #tpu.pipeline_mode<synchronous>, transform_indices = @transform_5, window_bounds = array<i64: 16, 32>}, {pipeline_mode = #tpu.pipeline_mode<synchronous>, transform_indices = @transform_6, window_bounds = array<i64: 1, 32>}, {pipeline_mode = #tpu.pipeline_mode<synchronous>, transform_indices = @transform_7, window_bounds = array<i64: 133, 32>}, {pipeline_mode = #tpu.pipeline_mode<synchronous>, transform_indices = @transform_8, window_bounds = array<i64: 1, 32>}, {pipeline_mode = #tpu.pipeline_mode<synchronous>, transform_indices = @transform_9, window_bounds = array<i64: 1, 32>}, {pipeline_mode = #tpu.pipeline_mode<synchronous>, transform_indices = @transform_10, window_bounds = array<i64: 1, 32>}, {pipeline_mode = #tpu.pipeline_mode<synchronous>, transform_indices = @transform_11, window_bounds = array<i64: 32, 16>}, {pipeline_mode = #tpu.pipeline_mode<synchronous>, transform_indices = @transform_12, window_bounds = array<i64: 1, 16>}, {pipeline_mode = #tpu.pipeline_mode<synchronous>, transform_indices = @transform_13, window_bounds = array<i64: 16, 32>}, {pipeline_mode = #tpu.pipeline_mode<synchronous>, transform_indices = @transform_14, window_bounds = array<i64: 1, 32>}, {pipeline_mode = #tpu.pipeline_mode<synchronous>, transform_indices = @transform_15, window_bounds = array<i64: 32, 32>}, {pipeline_mode = #tpu.pipeline_mode<synchronous>, transform_indices = @transform_16, window_bounds = array<i64: 1, 32>}, {pipeline_mode = #tpu.pipeline_mode<synchronous>, transform_indices = @transform_17, window_bounds = array<i64: 32, 32>}, {pipeline_mode = #tpu.pipeline_mode<synchronous>, transform_indices = @transform_18, window_bounds = array<i64: 1, 32>}, {transform_indices = @transform_19, window_bounds = array<i64: 8, 8, 32>}]} {
    %c0 = arith.constant 0 : index
    %c0_0 = arith.constant 0 : index
    %c0_1 = arith.constant 0 : index
    %0 = vector.load %arg1[%c0, %c0_0, %c0_1] : memref<8x8x32xf32, #tpu.memory_space<vmem>>, vector<8x8x32xf32>
    %1 = vector.shape_cast %0 : vector<8x8x32xf32> to vector<64x32xf32>
    %c0_2 = arith.constant 0 : index
    %c0_3 = arith.constant 0 : index
    %2 = vector.load %arg4[%c0_2, %c0_3] : memref<32x16xf32, #tpu.memory_space<vmem>>, vector<32x16xf32>
    %cst = arith.constant dense<0.000000e+00> : vector<64x16xf32>
    %3 = tpu.matmul %1, %2, %cst {dimension_numbers = #tpu.dot_dimension_numbers<[1], [0], [0], [1], [0, 0, 1, 1], [], []>} : vector<64x32xf32>, vector<32x16xf32>, vector<64x16xf32> -> vector<64x16xf32>
    %c0_4 = arith.constant 0 : index
    %c0_5 = arith.constant 0 : index
    %4 = vector.load %arg5[%c0_4, %c0_5] : memref<1x16xf32, #tpu.memory_space<vmem>>, vector<1x16xf32>
    %5 = vector.broadcast %4 : vector<1x16xf32> to vector<64x16xf32>
    %6 = arith.addf %3, %5 : vector<64x16xf32>
    %cst_6 = arith.constant 0.000000e+00 : f32
    %7 = vector.broadcast %cst_6 : f32 to vector<64x16xf32>
    %8 = arith.maximumf %6, %7 : vector<64x16xf32>
    %c0_7 = arith.constant 0 : index
    %c0_8 = arith.constant 0 : index
    %9 = vector.load %arg6[%c0_7, %c0_8] : memref<16x32xf32, #tpu.memory_space<vmem>>, vector<16x32xf32>
    %cst_9 = arith.constant dense<0.000000e+00> : vector<64x32xf32>
    %10 = tpu.matmul %8, %9, %cst_9 {dimension_numbers = #tpu.dot_dimension_numbers<[1], [0], [0], [1], [0, 0, 1, 1], [], []>} : vector<64x16xf32>, vector<16x32xf32>, vector<64x32xf32> -> vector<64x32xf32>
    %c0_10 = arith.constant 0 : index
    %c0_11 = arith.constant 0 : index
    %11 = vector.load %arg7[%c0_10, %c0_11] : memref<1x32xf32, #tpu.memory_space<vmem>>, vector<1x32xf32>
    %12 = vector.broadcast %11 : vector<1x32xf32> to vector<64x32xf32>
    %13 = arith.addf %10, %12 : vector<64x32xf32>
    %14 = arith.addf %13, %1 : vector<64x32xf32>
    %c0_12 = arith.constant 0 : index
    %c0_13 = arith.constant 0 : index
    %15 = vector.load %arg2[%c0_12, %c0_13] : memref<8x133xf32, #tpu.memory_space<vmem>>, vector<8x133xf32>
    %c0_14 = arith.constant 0 : index
    %c0_15 = arith.constant 0 : index
    %16 = vector.load %arg8[%c0_14, %c0_15] : memref<133x32xf32, #tpu.memory_space<vmem>>, vector<133x32xf32>
    %cst_16 = arith.constant dense<0.000000e+00> : vector<8x32xf32>
    %17 = tpu.matmul %15, %16, %cst_16 {dimension_numbers = #tpu.dot_dimension_numbers<[1], [0], [0], [1], [0, 0, 1, 1], [], []>} : vector<8x133xf32>, vector<133x32xf32>, vector<8x32xf32> -> vector<8x32xf32>
    %c0_17 = arith.constant 0 : index
    %c0_18 = arith.constant 0 : index
    %18 = vector.load %arg9[%c0_17, %c0_18] : memref<1x32xf32, #tpu.memory_space<vmem>>, vector<1x32xf32>
    %19 = vector.broadcast %18 : vector<1x32xf32> to vector<8x32xf32>
    %20 = arith.addf %17, %19 : vector<8x32xf32>
    %cst_19 = arith.constant 0.000000e+00 : f32
    %21 = vector.broadcast %cst_19 : f32 to vector<8x32xf32>
    %22 = arith.maximumf %20, %21 : vector<8x32xf32>
    %cst_20 = arith.constant dense<0.000000e+00> : vector<8xf32>
    %23 = vector.multi_reduction <add>, %22, %cst_20 [1] : vector<8x32xf32> to vector<8xf32>
    %24 = vector.shape_cast %23 : vector<8xf32> to vector<8x1xf32>
    %cst_21 = arith.constant 3.200000e+01 : f32
    %25 = vector.broadcast %cst_21 : f32 to vector<8x1xf32>
    %26 = arith.divf %24, %25 : vector<8x1xf32>
    %27 = vector.broadcast %26 : vector<8x1xf32> to vector<8x32xf32>
    %28 = arith.subf %22, %27 : vector<8x32xf32>
    %29 = arith.mulf %28, %28 : vector<8x32xf32>
    %cst_22 = arith.constant dense<0.000000e+00> : vector<8xf32>
    %30 = vector.multi_reduction <add>, %29, %cst_22 [1] : vector<8x32xf32> to vector<8xf32>
    %31 = vector.shape_cast %30 : vector<8xf32> to vector<8x1xf32>
    %cst_23 = arith.constant 3.200000e+01 : f32
    %32 = vector.broadcast %cst_23 : f32 to vector<8x1xf32>
    %33 = arith.divf %31, %32 : vector<8x1xf32>
    %34 = vector.broadcast %26 : vector<8x1xf32> to vector<8x32xf32>
    %35 = arith.subf %22, %34 : vector<8x32xf32>
    %cst_24 = arith.constant 9.99999974E-6 : f32
    %36 = vector.broadcast %cst_24 : f32 to vector<8x1xf32>
    %37 = arith.addf %33, %36 : vector<8x1xf32>
    %38 = math.rsqrt %37 : vector<8x1xf32>
    %39 = vector.broadcast %38 : vector<8x1xf32> to vector<8x32xf32>
    %40 = arith.mulf %35, %39 : vector<8x32xf32>
    %c0_25 = arith.constant 0 : index
    %c0_26 = arith.constant 0 : index
    %41 = vector.load %arg10[%c0_25, %c0_26] : memref<1x32xf32, #tpu.memory_space<vmem>>, vector<1x32xf32>
    %42 = vector.broadcast %41 : vector<1x32xf32> to vector<8x32xf32>
    %43 = arith.mulf %40, %42 : vector<8x32xf32>
    %c0_27 = arith.constant 0 : index
    %c0_28 = arith.constant 0 : index
    %44 = vector.load %arg11[%c0_27, %c0_28] : memref<1x32xf32, #tpu.memory_space<vmem>>, vector<1x32xf32>
    %45 = vector.broadcast %44 : vector<1x32xf32> to vector<8x32xf32>
    %46 = arith.addf %43, %45 : vector<8x32xf32>
    %c0_29 = arith.constant 0 : index
    %c0_30 = arith.constant 0 : index
    %47 = vector.load %arg12[%c0_29, %c0_30] : memref<32x16xf32, #tpu.memory_space<vmem>>, vector<32x16xf32>
    %cst_31 = arith.constant dense<0.000000e+00> : vector<8x16xf32>
    %48 = tpu.matmul %46, %47, %cst_31 {dimension_numbers = #tpu.dot_dimension_numbers<[1], [0], [0], [1], [0, 0, 1, 1], [], []>} : vector<8x32xf32>, vector<32x16xf32>, vector<8x16xf32> -> vector<8x16xf32>
    %c0_32 = arith.constant 0 : index
    %c0_33 = arith.constant 0 : index
    %49 = vector.load %arg13[%c0_32, %c0_33] : memref<1x16xf32, #tpu.memory_space<vmem>>, vector<1x16xf32>
    %50 = vector.broadcast %49 : vector<1x16xf32> to vector<8x16xf32>
    %51 = arith.addf %48, %50 : vector<8x16xf32>
    %cst_34 = arith.constant 0.000000e+00 : f32
    %52 = vector.broadcast %cst_34 : f32 to vector<8x16xf32>
    %53 = arith.maximumf %51, %52 : vector<8x16xf32>
    %c0_35 = arith.constant 0 : index
    %c0_36 = arith.constant 0 : index
    %54 = vector.load %arg14[%c0_35, %c0_36] : memref<16x32xf32, #tpu.memory_space<vmem>>, vector<16x32xf32>
    %cst_37 = arith.constant dense<0.000000e+00> : vector<8x32xf32>
    %55 = tpu.matmul %53, %54, %cst_37 {dimension_numbers = #tpu.dot_dimension_numbers<[1], [0], [0], [1], [0, 0, 1, 1], [], []>} : vector<8x16xf32>, vector<16x32xf32>, vector<8x32xf32> -> vector<8x32xf32>
    %c0_38 = arith.constant 0 : index
    %c0_39 = arith.constant 0 : index
    %56 = vector.load %arg15[%c0_38, %c0_39] : memref<1x32xf32, #tpu.memory_space<vmem>>, vector<1x32xf32>
    %57 = vector.broadcast %56 : vector<1x32xf32> to vector<8x32xf32>
    %58 = arith.addf %55, %57 : vector<8x32xf32>
    %59 = arith.addf %58, %46 : vector<8x32xf32>
    %60 = vector.shape_cast %14 : vector<64x32xf32> to vector<8x8x32xf32>
    %61 = vector.shape_cast %59 : vector<8x32xf32> to vector<8x1x32xf32>
    %c0_40 = arith.constant 0 : index
    %c0_41 = arith.constant 0 : index
    %c0_42 = arith.constant 0 : index
    %62 = vector.load %arg3[%c0_40, %c0_41, %c0_42] : memref<8x1x1xi32, #tpu.memory_space<vmem>>, vector<8x1x1xi32>
    %63 = tpu.iota {dimensions = array<i32: 1>} : vector<8x8x1xi32>
    %64 = vector.broadcast %62 : vector<8x1x1xi32> to vector<8x8x1xi32>
    %65 = arith.cmpi slt, %63, %64 : vector<8x8x1xi32>
    %66 = arith.extui %65 : vector<8x8x1xi1> to vector<8x8x1xi32>
    %67 = arith.sitofp %66 : vector<8x8x1xi32> to vector<8x8x1xf32>
    %68 = vector.broadcast %61 : vector<8x1x32xf32> to vector<8x8x32xf32>
    %69 = arith.mulf %60, %68 : vector<8x8x32xf32>
    %cst_43 = arith.constant dense<0.000000e+00> : vector<8x8xf32>
    %70 = vector.multi_reduction <add>, %69, %cst_43 [2] : vector<8x8x32xf32> to vector<8x8xf32>
    %71 = vector.shape_cast %70 : vector<8x8xf32> to vector<8x8x1xf32>
    %cst_44 = arith.constant 0.176776692 : f32
    %72 = vector.broadcast %cst_44 : f32 to vector<8x8x1xf32>
    %73 = arith.mulf %71, %72 : vector<8x8x1xf32>
    %74 = arith.negf %73 : vector<8x8x1xf32>
    %75 = math.exp %74 : vector<8x8x1xf32>
    %cst_45 = arith.constant 1.000000e+00 : f32
    %76 = vector.broadcast %cst_45 : f32 to vector<8x8x1xf32>
    %77 = arith.addf %76, %75 : vector<8x8x1xf32>
    %78 = arith.divf %76, %77 : vector<8x8x1xf32>
    %79 = arith.mulf %78, %67 : vector<8x8x1xf32>
    %80 = vector.broadcast %79 : vector<8x8x1xf32> to vector<8x8x32xf32>
    %81 = arith.mulf %80, %60 : vector<8x8x32xf32>
    %82 = vector.shape_cast %81 : vector<8x8x32xf32> to vector<64x32xf32>
    %83 = vector.broadcast %61 : vector<8x1x32xf32> to vector<8x8x32xf32>
    %84 = vector.broadcast %67 : vector<8x8x1xf32> to vector<8x8x32xf32>
    %85 = arith.mulf %83, %84 : vector<8x8x32xf32>
    %86 = vector.shape_cast %85 : vector<8x8x32xf32> to vector<64x32xf32>
    %c0_46 = arith.constant 0 : index
    %c0_47 = arith.constant 0 : index
    %87 = vector.load %arg16[%c0_46, %c0_47] : memref<32x32xf32, #tpu.memory_space<vmem>>, vector<32x32xf32>
    %cst_48 = arith.constant dense<0.000000e+00> : vector<64x32xf32>
    %88 = tpu.matmul %82, %87, %cst_48 {dimension_numbers = #tpu.dot_dimension_numbers<[1], [0], [0], [1], [0, 0, 1, 1], [], []>} : vector<64x32xf32>, vector<32x32xf32>, vector<64x32xf32> -> vector<64x32xf32>
    %c0_49 = arith.constant 0 : index
    %c0_50 = arith.constant 0 : index
    %89 = vector.load %arg17[%c0_49, %c0_50] : memref<1x32xf32, #tpu.memory_space<vmem>>, vector<1x32xf32>
    %90 = vector.broadcast %89 : vector<1x32xf32> to vector<64x32xf32>
    %91 = arith.addf %88, %90 : vector<64x32xf32>
    %92 = math.tanh %91 : vector<64x32xf32>
    %93 = arith.mulf %82, %92 : vector<64x32xf32>
    %94 = arith.addf %93, %86 : vector<64x32xf32>
    %c0_51 = arith.constant 0 : index
    %c0_52 = arith.constant 0 : index
    %95 = vector.load %arg18[%c0_51, %c0_52] : memref<32x32xf32, #tpu.memory_space<vmem>>, vector<32x32xf32>
    %cst_53 = arith.constant dense<0.000000e+00> : vector<64x32xf32>
    %96 = tpu.matmul %94, %95, %cst_53 {dimension_numbers = #tpu.dot_dimension_numbers<[1], [0], [0], [1], [0, 0, 1, 1], [], []>} : vector<64x32xf32>, vector<32x32xf32>, vector<64x32xf32> -> vector<64x32xf32>
    %c0_54 = arith.constant 0 : index
    %c0_55 = arith.constant 0 : index
    %97 = vector.load %arg19[%c0_54, %c0_55] : memref<1x32xf32, #tpu.memory_space<vmem>>, vector<1x32xf32>
    %98 = vector.broadcast %97 : vector<1x32xf32> to vector<64x32xf32>
    %99 = arith.addf %96, %98 : vector<64x32xf32>
    %cst_56 = arith.constant 0.000000e+00 : f32
    %100 = vector.broadcast %cst_56 : f32 to vector<64x32xf32>
    %101 = arith.maximumf %99, %100 : vector<64x32xf32>
    %102 = vector.shape_cast %101 : vector<64x32xf32> to vector<8x8x32xf32>
    %c0_57 = arith.constant 0 : index
    %c0_58 = arith.constant 0 : index
    %c0_59 = arith.constant 0 : index
    %103 = vector.load %arg20[%c0_57, %c0_58, %c0_59] : memref<8x8x32xf32, #tpu.memory_space<vmem>>, vector<8x8x32xf32>
    tpu.vector_store %arg20[%c0_57, %c0_58, %c0_59], %102 {strides = array<i32>} : memref<8x8x32xf32, #tpu.memory_space<vmem>>, vector<8x8x32xf32>,
    return
  }
  func.func @transform_0(%arg0: i32) -> (i32, i32, i32) {
    %c0_i32 = arith.constant 0 : i32
    %c0_i32_0 = arith.constant 0 : i32
    %c0_i32_1 = arith.constant 0 : i32
    return %arg0, %c0_i32, %c0_i32_0 : i32, i32, i32
  }
  func.func @transform_1(%arg0: i32) -> (i32, i32) {
    %c0_i32 = arith.constant 0 : i32
    %c0_i32_0 = arith.constant 0 : i32
    return %arg0, %c0_i32 : i32, i32
  }
  func.func @transform_2(%arg0: i32) -> (i32, i32, i32) {
    %c0_i32 = arith.constant 0 : i32
    %c0_i32_0 = arith.constant 0 : i32
    %c0_i32_1 = arith.constant 0 : i32
    return %arg0, %c0_i32, %c0_i32_0 : i32, i32, i32
  }
  func.func @transform_3(%arg0: i32) -> (i32, i32) {
    %c0_i32 = arith.constant 0 : i32
    %c0_i32_0 = arith.constant 0 : i32
    %c0_i32_1 = arith.constant 0 : i32
    return %c0_i32, %c0_i32_0 : i32, i32
  }
  func.func @transform_4(%arg0: i32) -> (i32, i32) {
    %c0_i32 = arith.constant 0 : i32
    %c0_i32_0 = arith.constant 0 : i32
    %c0_i32_1 = arith.constant 0 : i32
    return %c0_i32, %c0_i32_0 : i32, i32
  }
  func.func @transform_5(%arg0: i32) -> (i32, i32) {
    %c0_i32 = arith.constant 0 : i32
    %c0_i32_0 = arith.constant 0 : i32
    %c0_i32_1 = arith.constant 0 : i32
    return %c0_i32, %c0_i32_0 : i32, i32
  }
  func.func @transform_6(%arg0: i32) -> (i32, i32) {
    %c0_i32 = arith.constant 0 : i32
    %c0_i32_0 = arith.constant 0 : i32
    %c0_i32_1 = arith.constant 0 : i32
    return %c0_i32, %c0_i32_0 : i32, i32
  }
  func.func @transform_7(%arg0: i32) -> (i32, i32) {
    %c0_i32 = arith.constant 0 : i32
    %c0_i32_0 = arith.constant 0 : i32
    %c0_i32_1 = arith.constant 0 : i32
    return %c0_i32, %c0_i32_0 : i32, i32
  }
  func.func @transform_8(%arg0: i32) -> (i32, i32) {
    %c0_i32 = arith.constant 0 : i32
    %c0_i32_0 = arith.constant 0 : i32
    %c0_i32_1 = arith.constant 0 : i32
    return %c0_i32, %c0_i32_0 : i32, i32
  }
  func.func @transform_9(%arg0: i32) -> (i32, i32) {
    %c0_i32 = arith.constant 0 : i32
    %c0_i32_0 = arith.constant 0 : i32
    %c0_i32_1 = arith.constant 0 : i32
    return %c0_i32, %c0_i32_0 : i32, i32
  }
  func.func @transform_10(%arg0: i32) -> (i32, i32) {
    %c0_i32 = arith.constant 0 : i32
    %c0_i32_0 = arith.constant 0 : i32
    %c0_i32_1 = arith.constant 0 : i32
    return %c0_i32, %c0_i32_0 : i32, i32
  }
  func.func @transform_11(%arg0: i32) -> (i32, i32) {
    %c0_i32 = arith.constant 0 : i32
    %c0_i32_0 = arith.constant 0 : i32
    %c0_i32_1 = arith.constant 0 : i32
    return %c0_i32, %c0_i32_0 : i32, i32
  }
  func.func @transform_12(%arg0: i32) -> (i32, i32) {
    %c0_i32 = arith.constant 0 : i32
    %c0_i32_0 = arith.constant 0 : i32
    %c0_i32_1 = arith.constant 0 : i32
    return %c0_i32, %c0_i32_0 : i32, i32
  }
  func.func @transform_13(%arg0: i32) -> (i32, i32) {
    %c0_i32 = arith.constant 0 : i32
    %c0_i32_0 = arith.constant 0 : i32
    %c0_i32_1 = arith.constant 0 : i32
    return %c0_i32, %c0_i32_0 : i32, i32
  }
  func.func @transform_14(%arg0: i32) -> (i32, i32) {
    %c0_i32 = arith.constant 0 : i32
    %c0_i32_0 = arith.constant 0 : i32
    %c0_i32_1 = arith.constant 0 : i32
    return %c0_i32, %c0_i32_0 : i32, i32
  }
  func.func @transform_15(%arg0: i32) -> (i32, i32) {
    %c0_i32 = arith.constant 0 : i32
    %c0_i32_0 = arith.constant 0 : i32
    %c0_i32_1 = arith.constant 0 : i32
    return %c0_i32, %c0_i32_0 : i32, i32
  }
  func.func @transform_16(%arg0: i32) -> (i32, i32) {
    %c0_i32 = arith.constant 0 : i32
    %c0_i32_0 = arith.constant 0 : i32
    %c0_i32_1 = arith.constant 0 : i32
    return %c0_i32, %c0_i32_0 : i32, i32
  }
  func.func @transform_17(%arg0: i32) -> (i32, i32) {
    %c0_i32 = arith.constant 0 : i32
    %c0_i32_0 = arith.constant 0 : i32
    %c0_i32_1 = arith.constant 0 : i32
    return %c0_i32, %c0_i32_0 : i32, i32
  }
  func.func @transform_18(%arg0: i32) -> (i32, i32) {
    %c0_i32 = arith.constant 0 : i32
    %c0_i32_0 = arith.constant 0 : i32
    %c0_i32_1 = arith.constant 0 : i32
    return %c0_i32, %c0_i32_0 : i32, i32
  }
  func.func @transform_19(%arg0: i32) -> (i32, i32, i32) {
    %c0_i32 = arith.constant 0 : i32
    %c0_i32_0 = arith.constant 0 : i32
    %c0_i32_1 = arith.constant 0 : i32
    return %arg0, %c0_i32, %c0_i32_0 : i32, i32, i32
  }
}

</mosaic_0001>

<llo_original>
// kernel: tpu_custom_call.1
$region0: #{tpu_custom_call.1}
  #allocation0 [shape = 'u32[]', space=smem, size = 0x4, offset = 0x4, fixed_abs, tag = 'smem constant byte address 0x4 - core index']
  #allocation1 [shape = 'u32[144,128]{1,0:T(1,128)}', space=vmem, size = 0x12000, scoped, tag = 'internal scratch']
  %s0 = inlined_call_operand.vmem [shape: f32[8,8,32], index: 0, kind: input, shape index: {}]
  %s1 = inlined_call_operand.vmem [shape: f32[8,133], index: 1, kind: input, shape index: {}]
  %s2 = inlined_call_operand.vmem [shape: s32[8,1,1], index: 2, kind: input, shape index: {}]
  %s3 = inlined_call_operand.vmem [shape: f32[32,16], index: 3, kind: input, shape index: {}]
  %s4 = inlined_call_operand.vmem [shape: f32[1,16], index: 4, kind: input, shape index: {}]
  %s5 = inlined_call_operand.vmem [shape: f32[16,32], index: 5, kind: input, shape index: {}]
  %s6 = inlined_call_operand.vmem [shape: f32[1,32], index: 6, kind: input, shape index: {}]
  %s7 = inlined_call_operand.vmem [shape: f32[133,32], index: 7, kind: input, shape index: {}]
  %s8 = inlined_call_operand.vmem [shape: f32[1,32], index: 8, kind: input, shape index: {}]
  %s9 = inlined_call_operand.vmem [shape: f32[1,32], index: 9, kind: input, shape index: {}]
  %s10 = inlined_call_operand.vmem [shape: f32[1,32], index: 10, kind: input, shape index: {}]
  %s11 = inlined_call_operand.vmem [shape: f32[32,16], index: 11, kind: input, shape index: {}]
  %s12 = inlined_call_operand.vmem [shape: f32[1,16], index: 12, kind: input, shape index: {}]
  %s13 = inlined_call_operand.vmem [shape: f32[16,32], index: 13, kind: input, shape index: {}]
  %s14 = inlined_call_operand.vmem [shape: f32[1,32], index: 14, kind: input, shape index: {}]
  %s15 = inlined_call_operand.vmem [shape: f32[32,32], index: 15, kind: input, shape index: {}]
  %s16 = inlined_call_operand.vmem [shape: f32[1,32], index: 16, kind: input, shape index: {}]
  %s17 = inlined_call_operand.vmem [shape: f32[32,32], index: 17, kind: input, shape index: {}]
  %s18 = inlined_call_operand.vmem [shape: f32[1,32], index: 18, kind: input, shape index: {}]
  %s19 = inlined_call_operand.hbm [shape: f32[8,8,32], index: 19, kind: output, shape index: {}]
  %s20 = sld [smem:[#allocation0]]
  $region86: #{tpu_custom_call.1} parent=0
    _
  %s22 = ssub.s32 1, %s20
  %s23 = scalar_select 0, %s22, %s20
  $region1: #{tpu_custom_call.1} parent=0
    #allocation2 [shape = 'u8[32768]{0}', space=vmem, size = 0x8000, scoped, tag = 'output window, operand 0, single buffered']
    #allocation3 [shape = 's32[1]{0}', space=sflag, size = 0x4, scoped, tag = 'scoped memory for tpu_custom_call.1']
    %24 = vsyncpa [#allocation3], 0
    // Predicated region
    $region2: #{tpu_custom_call.1} parent=1 // pred_check
      _
    $region3: #{tpu_custom_call.1} parent=1 // pred_check_branch
      %26 = sbr.rel (0) target = $region5
    $region4: #{tpu_custom_call.1} parent=1 // pred_region
      _
    $region5: #{tpu_custom_call.1} parent=1 // pred_fallthru
      _
    // Predicated region
    $region6: #{tpu_custom_call.1} parent=1 // pred_check
      _
    $region7: #{tpu_custom_call.1} parent=1 // pred_check_branch
      %28 = sbr.rel (0) target = $region9
    $region8: #{tpu_custom_call.1} parent=1 // pred_region
      _
    $region9: #{tpu_custom_call.1} parent=1 // pred_fallthru
      _
    // Predicated region
    $region10: #{tpu_custom_call.1} parent=1 // pred_check
      _
    $region11: #{tpu_custom_call.1} parent=1 // pred_check_branch
      %30 = sbr.rel (0) target = $region13
    $region12: #{tpu_custom_call.1} parent=1 // pred_region
      _
    $region13: #{tpu_custom_call.1} parent=1 // pred_fallthru
      _
    // Predicated region
    $region14: #{tpu_custom_call.1} parent=1 // pred_check
      _
    $region15: #{tpu_custom_call.1} parent=1 // pred_check_branch
      %32 = sbr.rel (0) target = $region17
    $region16: #{tpu_custom_call.1} parent=1 // pred_region
      _
    $region17: #{tpu_custom_call.1} parent=1 // pred_fallthru
      _
    // Predicated region
    $region18: #{tpu_custom_call.1} parent=1 // pred_check
      _
    $region19: #{tpu_custom_call.1} parent=1 // pred_check_branch
      %34 = sbr.rel (0) target = $region21
    $region20: #{tpu_custom_call.1} parent=1 // pred_region
      _
    $region21: #{tpu_custom_call.1} parent=1 // pred_fallthru
      _
    // Predicated region
    $region22: #{tpu_custom_call.1} parent=1 // pred_check
      _
    $region23: #{tpu_custom_call.1} parent=1 // pred_check_branch
      %36 = sbr.rel (0) target = $region25
    $region24: #{tpu_custom_call.1} parent=1 // pred_region
      _
    $region25: #{tpu_custom_call.1} parent=1 // pred_fallthru
      _
    // Predicated region
    $region26: #{tpu_custom_call.1} parent=1 // pred_check
      _
    $region27: #{tpu_custom_call.1} parent=1 // pred_check_branch
      %38 = sbr.rel (0) target = $region29
    $region28: #{tpu_custom_call.1} parent=1 // pred_region
      _
    $region29: #{tpu_custom_call.1} parent=1 // pred_fallthru
      _
    // Predicated region
    $region30: #{tpu_custom_call.1} parent=1 // pred_check
      _
    $region31: #{tpu_custom_call.1} parent=1 // pred_check_branch
      %40 = sbr.rel (0) target = $region33
    $region32: #{tpu_custom_call.1} parent=1 // pred_region
      _
    $region33: #{tpu_custom_call.1} parent=1 // pred_fallthru
      _
    // Predicated region
    $region34: #{tpu_custom_call.1} parent=1 // pred_check
      _
    $region35: #{tpu_custom_call.1} parent=1 // pred_check_branch
      %42 = sbr.rel (0) target = $region37
    $region36: #{tpu_custom_call.1} parent=1 // pred_region
      _
    $region37: #{tpu_custom_call.1} parent=1 // pred_fallthru
      _
    // Predicated region
    $region38: #{tpu_custom_call.1} parent=1 // pred_check
      _
    $region39: #{tpu_custom_call.1} parent=1 // pred_check_branch
      %44 = sbr.rel (0) target = $region41
    $region40: #{tpu_custom_call.1} parent=1 // pred_region
      _
    $region41: #{tpu_custom_call.1} parent=1 // pred_fallthru
      _
    // Predicated region
    $region42: #{tpu_custom_call.1} parent=1 // pred_check
      _
    $region43: #{tpu_custom_call.1} parent=1 // pred_check_branch
      %46 = sbr.rel (0) target = $region45
    $region44: #{tpu_custom_call.1} parent=1 // pred_region
      _
    $region45: #{tpu_custom_call.1} parent=1 // pred_fallthru
      _
    // Predicated region
    $region46: #{tpu_custom_call.1} parent=1 // pred_check
      _
    $region47: #{tpu_custom_call.1} parent=1 // pred_check_branch
      %48 = sbr.rel (0) target = $region49
    $region48: #{tpu_custom_call.1} parent=1 // pred_region
      _
    $region49: #{tpu_custom_call.1} parent=1 // pred_fallthru
      _
    // Predicated region
    $region50: #{tpu_custom_call.1} parent=1 // pred_check
      _
    $region51: #{tpu_custom_call.1} parent=1 // pred_check_branch
      %50 = sbr.rel (0) target = $region53
    $region52: #{tpu_custom_call.1} parent=1 // pred_region
      _
    $region53: #{tpu_custom_call.1} parent=1 // pred_fallthru
      _
    // Predicated region
    $region54: #{tpu_custom_call.1} parent=1 // pred_check
      _
    $region55: #{tpu_custom_call.1} parent=1 // pred_check_branch
      %52 = sbr.rel (0) target = $region57
    $region56: #{tpu_custom_call.1} parent=1 // pred_region
      _
    $region57: #{tpu_custom_call.1} parent=1 // pred_fallthru
      _
    // Predicated region
    $region58: #{tpu_custom_call.1} parent=1 // pred_check
      _
    $region59: #{tpu_custom_call.1} parent=1 // pred_check_branch
      %54 = sbr.rel (0) target = $region61
    $region60: #{tpu_custom_call.1} parent=1 // pred_region
      _
    $region61: #{tpu_custom_call.1} parent=1 // pred_fallthru
      _
    // Predicated region
    $region62: #{tpu_custom_call.1} parent=1 // pred_check
      _
    $region63: #{tpu_custom_call.1} parent=1 // pred_check_branch
      %56 = sbr.rel (0) target = $region65
    $region64: #{tpu_custom_call.1} parent=1 // pred_region
      _
    $region65: #{tpu_custom_call.1} parent=1 // pred_fallthru
      _
    // Predicated region
    $region66: #{tpu_custom_call.1} parent=1 // pred_check
      _
    $region67: #{tpu_custom_call.1} parent=1 // pred_check_branch
      %58 = sbr.rel (0) target = $region69
    $region68: #{tpu_custom_call.1} parent=1 // pred_region
      _
    $region69: #{tpu_custom_call.1} parent=1 // pred_fallthru
      _
    // Predicated region
    $region70: #{tpu_custom_call.1} parent=1 // pred_check
      _
    $region71: #{tpu_custom_call.1} parent=1 // pred_check_branch
      %60 = sbr.rel (0) target = $region73
    $region72: #{tpu_custom_call.1} parent=1 // pred_region
      _
    $region73: #{tpu_custom_call.1} parent=1 // pred_fallthru
      _
    // Predicated region
    $region74: #{tpu_custom_call.1} parent=1 // pred_check
      _
    $region75: #{tpu_custom_call.1} parent=1 // pred_check_branch
      %62 = sbr.rel (0) target = $region77
    $region76: #{tpu_custom_call.1} parent=1 // pred_region
      _
    $region77: #{tpu_custom_call.1} parent=1 // pred_fallthru
      _
    %v63 = vld [vmem:[%s0] sm:$0xff]
    %v64 = vld [vmem:[%s0 + $0x8] sm:$0xff]
    %v65 = vld [vmem:[%s0 + $0x10] sm:$0xff]
    %v66 = vld [vmem:[%s0 + $0x18] sm:$0xff]
    %v67 = vld [vmem:[%s0 + $0x20] sm:$0xff]
    %v68 = vld [vmem:[%s0 + $0x28] sm:$0xff]
    %v69 = vld [vmem:[%s0 + $0x30] sm:$0xff]
    %v70 = vld [vmem:[%s0 + $0x38] sm:$0xff]
    %v71 = vld [vmem:[%s3] sm:$0xff]
    %v72 = vld [vmem:[%s3 + $0x8] sm:$0xff]
    %v73 = vld [vmem:[%s3 + $0x10] sm:$0xff]
    %v74 = vld [vmem:[%s3 + $0x18] sm:$0xff]
    %v75 = vld [vmem:[%s4] sm:$0x1]
    %v77 = vlaneseq
    %v78 = vshrl.u32 %v77, 7
    %v79 = vsub.s32 0, %v78
    %v80 = vrot.slane %v75, %v79
    %vm82 = vcmask 261120
    %v84 = vsel %vm82, %v63, 0
    %v87 = vsel %vm82, %v64, 0
    %v90 = vsel %vm82, %v65, 0
    %v93 = vsel %vm82, %v66, 0
    %v96 = vsel %vm82, %v67, 0
    %v99 = vsel %vm82, %v68, 0
    %v102 = vsel %vm82, %v69, 0
    %v105 = vsel %vm82, %v70, 0
    %107 = vmatprep.subr.mxu0 0.0
    %108 = vmatpush1.msra.mxu0 %v71
    %109 = vmatprep.subr.mxu0 0.0
    %110 = vmatpush1.msra.mxu0 %v72
    %111 = vmatprep.subr.mxu0 0.0
    %112 = vmatpush1.msra.mxu0 %v73
    %113 = vmatprep.subr.mxu0 0.0
    %114 = vmatpush1.msra.mxu0 %v74
    %115 = vmatprep.subr.mxu0 0.0
    %116 = vmatpush1.msra.mxu0 0.0
    %117 = vmatprep.subr.mxu0 0.0
    %118 = vmatpush1.msra.mxu0 0.0
    %119 = vmatprep.subr.mxu0 0.0
    %120 = vmatpush1.msra.mxu0 0.0
    %121 = vmatprep.subr.mxu0 0.0
    %122 = vmatpush1.msra.mxu0 0.0
    %123 = vmatprep.subr.mxu0 0.0
    %124 = vmatpush1.msra.mxu0 0.0
    %125 = vmatprep.subr.mxu0 0.0
    %126 = vmatpush1.msra.mxu0 0.0
    %127 = vmatprep.subr.mxu0 0.0
    %128 = vmatpush1.msra.mxu0 0.0
    %129 = vmatprep.subr.mxu0 0.0
    %130 = vmatpush1.msra.mxu0 0.0
    %131 = vmatprep.subr.mxu0 0.0
    %132 = vmatpush1.msra.mxu0 0.0
    %133 = vmatprep.subr.mxu0 0.0
    %134 = vmatpush1.msra.mxu0 0.0
    %135 = vmatprep.subr.mxu0 0.0
    %136 = vmatpush1.msra.mxu0 0.0
    %137 = vmatprep.subr.mxu0 0.0
    %138 = vmatpush1.msra.mxu0 0.0
    %139 = vmatprep.subr.mxu0 0.0
    %140 = vmatpush1.msra.mxu0 0.0
    %141 = vmatprep.subr.mxu0 0.0
    %142 = vmatpush1.msra.mxu0 0.0
    %143 = vmatprep.subr.mxu0 0.0
    %144 = vmatpush1.msra.mxu0 0.0
    %145 = vmatprep.subr.mxu0 0.0
    %146 = vmatpush1.msra.mxu0 0.0
    %147 = vmatprep.subr.mxu0 0.0
    %148 = vmatpush1.msra.mxu0 0.0
    %149 = vmatprep.subr.mxu0 0.0
    %150 = vmatpush1.msra.mxu0 0.0
    %151 = vmatprep.subr.mxu0 0.0
    %152 = vmatpush1.msra.mxu0 0.0
    %153 = vmatprep.subr.mxu0 0.0
    %154 = vmatpush1.msra.mxu0 0.0
    %155 = vmatprep.subr.mxu0 0.0
    %156 = vmatpush1.msra.mxu0 0.0
    %157 = vmatprep.subr.mxu0 0.0
    %158 = vmatpush1.msra.mxu0 0.0
    %159 = vmatprep.subr.mxu0 0.0
    %160 = vmatpush1.msra.mxu0 0.0
    %161 = vmatprep.subr.mxu0 0.0
    %162 = vmatpush1.msra.mxu0 0.0
    %163 = vmatprep.subr.mxu0 0.0
    %164 = vmatpush1.msra.mxu0 0.0
    %165 = vmatprep.subr.mxu0 0.0
    %166 = vmatpush1.msra.mxu0 0.0
    %167 = vmatprep.subr.mxu0 0.0
    %168 = vmatpush1.msra.mxu0 0.0
    %169 = vmatprep.subr.mxu0 0.0
    %170 = vmatpush1.msra.mxu0 0.0
    %171 = vmatprep.mubr.f32.mxu0 0.0
    %172 = vmatmul.mubr.f32.gmra.mrb[0].mxu0 %v84
    %v173 = vpop.f32.mrb[0].mxu0
    %v174 = vadd.f32 %v80, %v173
    %v175 = vpop.f32.mrb[0].mxu0
    %176 = vmatprep.mubr.f32.mxu0 0.0
    %177 = vmatmul.mubr.f32.gmra.mrb[0].mxu0 %v87
    %v178 = vpop.f32.mrb[0].mxu0
    %v179 = vadd.f32 %v80, %v178
    %v180 = vpop.f32.mrb[0].mxu0
    %181 = vmatprep.mubr.f32.mxu0 0.0
    %182 = vmatmul.mubr.f32.gmra.mrb[0].mxu0 %v90
    %v183 = vpop.f32.mrb[0].mxu0
    %v184 = vadd.f32 %v80, %v183
    %v185 = vpop.f32.mrb[0].mxu0
    %186 = vmatprep.mubr.f32.mxu0 0.0
    %187 = vmatmul.mubr.f32.gmra.mrb[0].mxu0 %v93
    %v188 = vpop.f32.mrb[0].mxu0
    %v189 = vadd.f32 %v80, %v188
    %v190 = vpop.f32.mrb[0].mxu0
    %191 = vmatprep.mubr.f32.mxu0 0.0
    %192 = vmatmul.mubr.f32.gmra.mrb[0].mxu0 %v96
    %v193 = vpop.f32.mrb[0].mxu0
    %v194 = vadd.f32 %v80, %v193
    %v195 = vpop.f32.mrb[0].mxu0
    %196 = vmatprep.mubr.f32.mxu0 0.0
    %197 = vmatmul.mubr.f32.gmra.mrb[0].mxu0 %v99
    %v198 = vpop.f32.mrb[0].mxu0
    %v199 = vadd.f32 %v80, %v198
    %v200 = vpop.f32.mrb[0].mxu0
    %201 = vmatprep.mubr.f32.mxu0 0.0
    %202 = vmatmul.mubr.f32.gmra.mrb[0].mxu0 %v102
    %v203 = vpop.f32.mrb[0].mxu0
    %v204 = vadd.f32 %v80, %v203
    %v205 = vpop.f32.mrb[0].mxu0
    %206 = vmatprep.mubr.f32.mxu0 0.0
    %207 = vmatmul.mubr.f32.gmra.mrb[0].mxu0 %v105
    %v208 = vpop.f32.mrb[0].mxu0
    %v209 = vadd.f32 %v80, %v208
    %v210 = vpop.f32.mrb[0].mxu0
    %211 = vdwg.mxu0
    %v212 = vmax.f32 %v174, 0.0
    %v213 = vmax.f32 %v179, 0.0
    %v214 = vmax.f32 %v184, 0.0
    %v215 = vmax.f32 %v189, 0.0
    %v216 = vmax.f32 %v194, 0.0
    %v217 = vmax.f32 %v199, 0.0
    %v218 = vmax.f32 %v204, 0.0
    %v219 = vmax.f32 %v209, 0.0
    %v220 = vld [vmem:[%s5] sm:$0xff]
    %v221 = vld [vmem:[%s5 + $0x8] sm:$0xff]
    %v222 = vld [vmem:[%s6] sm:$0x1]
    %v224 = vlaneseq
    %v225 = vshrl.u32 %v224, 7
    %v226 = vsub.s32 0, %v225
    %v227 = vrot.slane %v222, %v226
    %vm229 = vcmask 130048
    %v231 = vsel %vm229, %v212, 0
    %v234 = vsel %vm229, %v213, 0
    %v237 = vsel %vm229, %v214, 0
    %v240 = vsel %vm229, %v215, 0
    %v243 = vsel %vm229, %v216, 0
    %v246 = vsel %vm229, %v217, 0
    %v249 = vsel %vm229, %v218, 0
    %v252 = vsel %vm229, %v219, 0
    %254 = vmatprep.subr.mxu0 0.0
    %255 = vmatpush1.msra.mxu0 %v220
    %256 = vmatprep.subr.mxu0 0.0
    %257 = vmatpush1.msra.mxu0 %v221
    %258 = vmatprep.subr.mxu0 0.0
    %259 = vmatpush1.msra.mxu0 0.0
    %260 = vmatprep.subr.mxu0 0.0
    %261 = vmatpush1.msra.mxu0 0.0
    %262 = vmatprep.subr.mxu0 0.0
    %263 = vmatpush1.msra.mxu0 0.0
    %264 = vmatprep.subr.mxu0 0.0
    %265 = vmatpush1.msra.mxu0 0.0
    %266 = vmatprep.subr.mxu0 0.0
    %267 = vmatpush1.msra.mxu0 0.0
    %268 = vmatprep.subr.mxu0 0.0
    %269 = vmatpush1.msra.mxu0 0.0
    %270 = vmatprep.subr.mxu0 0.0
    %271 = vmatpush1.msra.mxu0 0.0
    %272 = vmatprep.subr.mxu0 0.0
    %273 = vmatpush1.msra.mxu0 0.0
    %274 = vmatprep.subr.mxu0 0.0
    %275 = vmatpush1.msra.mxu0 0.0
    %276 = vmatprep.subr.mxu0 0.0
    %277 = vmatpush1.msra.mxu0 0.0
    %278 = vmatprep.subr.mxu0 0.0
    %279 = vmatpush1.msra.mxu0 0.0
    %280 = vmatprep.subr.mxu0 0.0
    %281 = vmatpush1.msra.mxu0 0.0
    %282 = vmatprep.subr.mxu0 0.0
    %283 = vmatpush1.msra.mxu0 0.0
    %284 = vmatprep.subr.mxu0 0.0
    %285 = vmatpush1.msra.mxu0 0.0
    %286 = vmatprep.subr.mxu0 0.0
    %287 = vmatpush1.msra.mxu0 0.0
    %288 = vmatprep.subr.mxu0 0.0
    %289 = vmatpush1.msra.mxu0 0.0
    %290 = vmatprep.subr.mxu0 0.0
    %291 = vmatpush1.msra.mxu0 0.0
    %292 = vmatprep.subr.mxu0 0.0
    %293 = vmatpush1.msra.mxu0 0.0
    %294 = vmatprep.subr.mxu0 0.0
    %295 = vmatpush1.msra.mxu0 0.0
    %296 = vmatprep.subr.mxu0 0.0
    %297 = vmatpush1.msra.mxu0 0.0
    %298 = vmatprep.subr.mxu0 0.0
    %299 = vmatpush1.msra.mxu0 0.0
    %300 = vmatprep.subr.mxu0 0.0
    %301 = vmatpush1.msra.mxu0 0.0
    %302 = vmatprep.subr.mxu0 0.0
    %303 = vmatpush1.msra.mxu0 0.0
    %304 = vmatprep.subr.mxu0 0.0
    %305 = vmatpush1.msra.mxu0 0.0
    %306 = vmatprep.subr.mxu0 0.0
    %307 = vmatpush1.msra.mxu0 0.0
    %308 = vmatprep.subr.mxu0 0.0
    %309 = vmatpush1.msra.mxu0 0.0
    %310 = vmatprep.subr.mxu0 0.0
    %311 = vmatpush1.msra.mxu0 0.0
    %312 = vmatprep.subr.mxu0 0.0
    %313 = vmatpush1.msra.mxu0 0.0
    %314 = vmatprep.subr.mxu0 0.0
    %315 = vmatpush1.msra.mxu0 0.0
    %316 = vmatprep.subr.mxu0 0.0
    %317 = vmatpush1.msra.mxu0 0.0
    %318 = vmatprep.mubr.f32.mxu0 0.0
    %319 = vmatmul.mubr.f32.gmra.mrb[0].mxu0 %v231
    %v320 = vpop.f32.mrb[0].mxu0
    %v321 = vadd.f32 %v227, %v320
    %v322 = vpop.f32.mrb[0].mxu0
    %323 = vmatprep.mubr.f32.mxu0 0.0
    %324 = vmatmul.mubr.f32.gmra.mrb[0].mxu0 %v234
    %v325 = vpop.f32.mrb[0].mxu0
    %v326 = vadd.f32 %v227, %v325
    %v327 = vpop.f32.mrb[0].mxu0
    %328 = vmatprep.mubr.f32.mxu0 0.0
    %329 = vmatmul.mubr.f32.gmra.mrb[0].mxu0 %v237
    %v330 = vpop.f32.mrb[0].mxu0
    %v331 = vadd.f32 %v227, %v330
    %v332 = vpop.f32.mrb[0].mxu0
    %333 = vmatprep.mubr.f32.mxu0 0.0
    %334 = vmatmul.mubr.f32.gmra.mrb[0].mxu0 %v240
    %v335 = vpop.f32.mrb[0].mxu0
    %v336 = vadd.f32 %v227, %v335
    %v337 = vpop.f32.mrb[0].mxu0
    %338 = vmatprep.mubr.f32.mxu0 0.0
    %339 = vmatmul.mubr.f32.gmra.mrb[0].mxu0 %v243
    %v340 = vpop.f32.mrb[0].mxu0
    %v341 = vadd.f32 %v227, %v340
    %v342 = vpop.f32.mrb[0].mxu0
    %343 = vmatprep.mubr.f32.mxu0 0.0
    %344 = vmatmul.mubr.f32.gmra.mrb[0].mxu0 %v246
    %v345 = vpop.f32.mrb[0].mxu0
    %v346 = vadd.f32 %v227, %v345
    %v347 = vpop.f32.mrb[0].mxu0
    %348 = vmatprep.mubr.f32.mxu0 0.0
    %349 = vmatmul.mubr.f32.gmra.mrb[0].mxu0 %v249
    %v350 = vpop.f32.mrb[0].mxu0
    %v351 = vadd.f32 %v227, %v350
    %v352 = vpop.f32.mrb[0].mxu0
    %353 = vmatprep.mubr.f32.mxu0 0.0
    %354 = vmatmul.mubr.f32.gmra.mrb[0].mxu0 %v252
    %v355 = vpop.f32.mrb[0].mxu0
    %v356 = vadd.f32 %v227, %v355
    %v357 = vpop.f32.mrb[0].mxu0
    %358 = vdwg.mxu0
    %v359 = vadd.f32 %v321, %v63
    %v360 = vadd.f32 %v326, %v64
    %v361 = vadd.f32 %v331, %v65
    %v362 = vadd.f32 %v336, %v66
    %v363 = vadd.f32 %v341, %v67
    %v364 = vadd.f32 %v346, %v68
    %v365 = vadd.f32 %v351, %v69
    %v366 = vadd.f32 %v356, %v70
    %v367 = vld [vmem:[%s1] sm:$0xff]
    %v368 = vld [vmem:[%s1 + $0x8] sm:$0xff]
    %v369 = vld [vmem:[%s7] sm:$0xff]
    %v370 = vld [vmem:[%s7 + $0x8] sm:$0xff]
    %v371 = vld [vmem:[%s7 + $0x10] sm:$0xff]
    %v372 = vld [vmem:[%s7 + $0x18] sm:$0xff]
    %v373 = vld [vmem:[%s7 + $0x20] sm:$0xff]
    %v374 = vld [vmem:[%s7 + $0x28] sm:$0xff]
    %v375 = vld [vmem:[%s7 + $0x30] sm:$0xff]
    %v376 = vld [vmem:[%s7 + $0x38] sm:$0xff]
    %v377 = vld [vmem:[%s7 + $0x40] sm:$0xff]
    %v378 = vld [vmem:[%s7 + $0x48] sm:$0xff]
    %v379 = vld [vmem:[%s7 + $0x50] sm:$0xff]
    %v380 = vld [vmem:[%s7 + $0x58] sm:$0xff]
    %v381 = vld [vmem:[%s7 + $0x60] sm:$0xff]
    %v382 = vld [vmem:[%s7 + $0x68] sm:$0xff]
    %v383 = vld [vmem:[%s7 + $0x70] sm:$0xff]
    %v384 = vld [vmem:[%s7 + $0x78] sm:$0xff]
    %v385 = vld [vmem:[%s7 + $0x80] sm:$0x1f]
    %v386 = vld [vmem:[%s8] sm:$0x1]
    %v388 = vlaneseq
    %v389 = vshrl.u32 %v388, 7
    %v390 = vsub.s32 0, %v389
    %v391 = vrot.slane %v386, %v390
    %vm393 = vcmask 39936
    %v395 = vsel %vm393, %v368, 0
    %vm397 = vcmask 1044480
    %v399 = vsel %vm397, %v385, 0
    %401 = vmatprep.subr.mxu0 0.0
    %402 = vmatpush1.msra.mxu0 %v369
    %403 = vmatprep.subr.mxu0 0.0
    %404 = vmatpush1.msra.mxu0 %v370
    %405 = vmatprep.subr.mxu0 0.0
    %406 = vmatpush1.msra.mxu0 %v371
    %407 = vmatprep.subr.mxu0 0.0
    %408 = vmatpush1.msra.mxu0 %v372
    %409 = vmatprep.subr.mxu0 0.0
    %410 = vmatpush1.msra.mxu0 %v373
    %411 = vmatprep.subr.mxu0 0.0
    %412 = vmatpush1.msra.mxu0 %v374
    %413 = vmatprep.subr.mxu0 0.0
    %414 = vmatpush1.msra.mxu0 %v375
    %415 = vmatprep.subr.mxu0 0.0
    %416 = vmatpush1.msra.mxu0 %v376
    %417 = vmatprep.subr.mxu0 0.0
    %418 = vmatpush1.msra.mxu0 %v377
    %419 = vmatprep.subr.mxu0 0.0
    %420 = vmatpush1.msra.mxu0 %v378
    %421 = vmatprep.subr.mxu0 0.0
    %422 = vmatpush1.msra.mxu0 %v379
    %423 = vmatprep.subr.mxu0 0.0
    %424 = vmatpush1.msra.mxu0 %v380
    %425 = vmatprep.subr.mxu0 0.0
    %426 = vmatpush1.msra.mxu0 %v381
    %427 = vmatprep.subr.mxu0 0.0
    %428 = vmatpush1.msra.mxu0 %v382
    %429 = vmatprep.subr.mxu0 0.0
    %430 = vmatpush1.msra.mxu0 %v383
    %431 = vmatprep.subr.mxu0 0.0
    %432 = vmatpush1.msra.mxu0 %v384
    %433 = vmatprep.subr.mxu0 0.0
    %434 = vmatpush1.msra.mxu0 %v399
    %435 = vmatprep.subr.mxu0 0.0
    %436 = vmatpush1.msra.mxu0 0.0
    %437 = vmatprep.subr.mxu0 0.0
    %438 = vmatpush1.msra.mxu0 0.0
    %439 = vmatprep.subr.mxu0 0.0
    %440 = vmatpush1.msra.mxu0 0.0
    %441 = vmatprep.subr.mxu0 0.0
    %442 = vmatpush1.msra.mxu0 0.0
    %443 = vmatprep.subr.mxu0 0.0
    %444 = vmatpush1.msra.mxu0 0.0
    %445 = vmatprep.subr.mxu0 0.0
    %446 = vmatpush1.msra.mxu0 0.0
    %447 = vmatprep.subr.mxu0 0.0
    %448 = vmatpush1.msra.mxu0 0.0
    %449 = vmatprep.subr.mxu0 0.0
    %450 = vmatpush1.msra.mxu0 0.0
    %451 = vmatprep.subr.mxu0 0.0
    %452 = vmatpush1.msra.mxu0 0.0
    %453 = vmatprep.subr.mxu0 0.0
    %454 = vmatpush1.msra.mxu0 0.0
    %455 = vmatprep.subr.mxu0 0.0
    %456 = vmatpush1.msra.mxu0 0.0
    %457 = vmatprep.subr.mxu0 0.0
    %458 = vmatpush1.msra.mxu0 0.0
    %459 = vmatprep.subr.mxu0 0.0
    %460 = vmatpush1.msra.mxu0 0.0
    %461 = vmatprep.subr.mxu0 0.0
    %462 = vmatpush1.msra.mxu0 0.0
    %463 = vmatprep.subr.mxu0 0.0
    %464 = vmatpush1.msra.mxu0 0.0
    %465 = vmatprep.mubr.f32.mxu0 %v395
    %466 = vmatmul.mubr.f32.gmra.mrb[0].mxu0 %v367
    %v467 = vpop.f32.mrb[0].mxu0
    %v468 = vadd.f32 %v391, %v467
    %v469 = vpop.f32.mrb[0].mxu0
    %470 = vdwg.mxu0
    %v471 = vmax.f32 %v468, 0.0
    %v472 = vsel %vm82, %v471, 0.0
    %473 = vadd.xlane.f32.xlu0 %v472
    %v474 = vpop.xlane.xlu0 %473
    %v475 = vrcp.pop 32.0
    %v476 = vmul.f32 %v474, %v475
    %v477 = vsub.f32 %v471, %v476
    %v478 = vmul.f32 %v477, %v477
    %v479 = vsel %vm82, %v478, 0.0
    %480 = vadd.xlane.f32.xlu0 %v479
    %v481 = vpop.xlane.xlu0 %480
    %v482 = vmul.f32 %v481, %v475
    %v483 = vadd.f32 %v482, 1e-05
    %v484 = vrsqrt.pop %v483
    %v485 = vmul.f32 %v477, %v484
    %v486 = vld [vmem:[%s9] sm:$0x1]
    %v488 = vlaneseq
    %v489 = vshrl.u32 %v488, 7
    %v490 = vsub.s32 0, %v489
    %v491 = vrot.slane %v486, %v490
    %v493 = vmul.f32 %v485, %v491
    %v494 = vld [vmem:[%s10] sm:$0x1]
    %v496 = vlaneseq
    %v497 = vshrl.u32 %v496, 7
    %v498 = vsub.s32 0, %v497
    %v499 = vrot.slane %v494, %v498
    %v501 = vadd.f32 %v493, %v499
    %v502 = vld [vmem:[%s11] sm:$0xff]
    %v503 = vld [vmem:[%s11 + $0x8] sm:$0xff]
    %v504 = vld [vmem:[%s11 + $0x10] sm:$0xff]
    %v505 = vld [vmem:[%s11 + $0x18] sm:$0xff]
    %v506 = vld [vmem:[%s12] sm:$0x1]
    %v508 = vlaneseq
    %v509 = vshrl.u32 %v508, 7
    %v510 = vsub.s32 0, %v509
    %v511 = vrot.slane %v506, %v510
    %v514 = vsel %vm82, %v501, 0
    %516 = vmatprep.subr.mxu0 0.0
    %517 = vmatpush1.msra.mxu0 %v502
    %518 = vmatprep.subr.mxu0 0.0
    %519 = vmatpush1.msra.mxu0 %v503
    %520 = vmatprep.subr.mxu0 0.0
    %521 = vmatpush1.msra.mxu0 %v504
    %522 = vmatprep.subr.mxu0 0.0
    %523 = vmatpush1.msra.mxu0 %v505
    %524 = vmatprep.subr.mxu0 0.0
    %525 = vmatpush1.msra.mxu0 0.0
    %526 = vmatprep.subr.mxu0 0.0
    %527 = vmatpush1.msra.mxu0 0.0
    %528 = vmatprep.subr.mxu0 0.0
    %529 = vmatpush1.msra.mxu0 0.0
    %530 = vmatprep.subr.mxu0 0.0
    %531 = vmatpush1.msra.mxu0 0.0
    %532 = vmatprep.subr.mxu0 0.0
    %533 = vmatpush1.msra.mxu0 0.0
    %534 = vmatprep.subr.mxu0 0.0
    %535 = vmatpush1.msra.mxu0 0.0
    %536 = vmatprep.subr.mxu0 0.0
    %537 = vmatpush1.msra.mxu0 0.0
    %538 = vmatprep.subr.mxu0 0.0
    %539 = vmatpush1.msra.mxu0 0.0
    %540 = vmatprep.subr.mxu0 0.0
    %541 = vmatpush1.msra.mxu0 0.0
    %542 = vmatprep.subr.mxu0 0.0
    %543 = vmatpush1.msra.mxu0 0.0
    %544 = vmatprep.subr.mxu0 0.0
    %545 = vmatpush1.msra.mxu0 0.0
    %546 = vmatprep.subr.mxu0 0.0
    %547 = vmatpush1.msra.mxu0 0.0
    %548 = vmatprep.subr.mxu0 0.0
    %549 = vmatpush1.msra.mxu0 0.0
    %550 = vmatprep.subr.mxu0 0.0
    %551 = vmatpush1.msra.mxu0 0.0
    %552 = vmatprep.subr.mxu0 0.0
    %553 = vmatpush1.msra.mxu0 0.0
    %554 = vmatprep.subr.mxu0 0.0
    %555 = vmatpush1.msra.mxu0 0.0
    %556 = vmatprep.subr.mxu0 0.0
    %557 = vmatpush1.msra.mxu0 0.0
    %558 = vmatprep.subr.mxu0 0.0
    %559 = vmatpush1.msra.mxu0 0.0
    %560 = vmatprep.subr.mxu0 0.0
    %561 = vmatpush1.msra.mxu0 0.0
    %562 = vmatprep.subr.mxu0 0.0
    %563 = vmatpush1.msra.mxu0 0.0
    %564 = vmatprep.subr.mxu0 0.0
    %565 = vmatpush1.msra.mxu0 0.0
    %566 = vmatprep.subr.mxu0 0.0
    %567 = vmatpush1.msra.mxu0 0.0
    %568 = vmatprep.subr.mxu0 0.0
    %569 = vmatpush1.msra.mxu0 0.0
    %570 = vmatprep.subr.mxu0 0.0
    %571 = vmatpush1.msra.mxu0 0.0
    %572 = vmatprep.subr.mxu0 0.0
    %573 = vmatpush1.msra.mxu0 0.0
    %574 = vmatprep.subr.mxu0 0.0
    %575 = vmatpush1.msra.mxu0 0.0
    %576 = vmatprep.subr.mxu0 0.0
    %577 = vmatpush1.msra.mxu0 0.0
    %578 = vmatprep.subr.mxu0 0.0
    %579 = vmatpush1.msra.mxu0 0.0
    %580 = vmatprep.mubr.f32.mxu0 0.0
    %581 = vmatmul.mubr.f32.gmra.mrb[0].mxu0 %v514
    %v582 = vpop.f32.mrb[0].mxu0
    %v583 = vadd.f32 %v511, %v582
    %v584 = vpop.f32.mrb[0].mxu0
    %585 = vdwg.mxu0
    %v586 = vmax.f32 %v583, 0.0
    %v587 = vld [vmem:[%s13] sm:$0xff]
    %v588 = vld [vmem:[%s13 + $0x8] sm:$0xff]
    %v589 = vld [vmem:[%s14] sm:$0x1]
    %v591 = vlaneseq
    %v592 = vshrl.u32 %v591, 7
    %v593 = vsub.s32 0, %v592
    %v594 = vrot.slane %v589, %v593
    %v597 = vsel %vm229, %v586, 0
    %599 = vmatprep.subr.mxu0 0.0
    %600 = vmatpush1.msra.mxu0 %v587
    %601 = vmatprep.subr.mxu0 0.0
    %602 = vmatpush1.msra.mxu0 %v588
    %603 = vmatprep.subr.mxu0 0.0
    %604 = vmatpush1.msra.mxu0 0.0
    %605 = vmatprep.subr.mxu0 0.0
    %606 = vmatpush1.msra.mxu0 0.0
    %607 = vmatprep.subr.mxu0 0.0
    %608 = vmatpush1.msra.mxu0 0.0
    %609 = vmatprep.subr.mxu0 0.0
    %610 = vmatpush1.msra.mxu0 0.0
    %611 = vmatprep.subr.mxu0 0.0
    %612 = vmatpush1.msra.mxu0 0.0
    %613 = vmatprep.subr.mxu0 0.0
    %614 = vmatpush1.msra.mxu0 0.0
    %615 = vmatprep.subr.mxu0 0.0
    %616 = vmatpush1.msra.mxu0 0.0
    %617 = vmatprep.subr.mxu0 0.0
    %618 = vmatpush1.msra.mxu0 0.0
    %619 = vmatprep.subr.mxu0 0.0
    %620 = vmatpush1.msra.mxu0 0.0
    %621 = vmatprep.subr.mxu0 0.0
    %622 = vmatpush1.msra.mxu0 0.0
    %623 = vmatprep.subr.mxu0 0.0
    %624 = vmatpush1.msra.mxu0 0.0
    %625 = vmatprep.subr.mxu0 0.0
    %626 = vmatpush1.msra.mxu0 0.0
    %627 = vmatprep.subr.mxu0 0.0
    %628 = vmatpush1.msra.mxu0 0.0
    %629 = vmatprep.subr.mxu0 0.0
    %630 = vmatpush1.msra.mxu0 0.0
    %631 = vmatprep.subr.mxu0 0.0
    %632 = vmatpush1.msra.mxu0 0.0
    %633 = vmatprep.subr.mxu0 0.0
    %634 = vmatpush1.msra.mxu0 0.0
    %635 = vmatprep.subr.mxu0 0.0
    %636 = vmatpush1.msra.mxu0 0.0
    %637 = vmatprep.subr.mxu0 0.0
    %638 = vmatpush1.msra.mxu0 0.0
    %639 = vmatprep.subr.mxu0 0.0
    %640 = vmatpush1.msra.mxu0 0.0
    %641 = vmatprep.subr.mxu0 0.0
    %642 = vmatpush1.msra.mxu0 0.0
    %643 = vmatprep.subr.mxu0 0.0
    %644 = vmatpush1.msra.mxu0 0.0
    %645 = vmatprep.subr.mxu0 0.0
    %646 = vmatpush1.msra.mxu0 0.0
    %647 = vmatprep.subr.mxu0 0.0
    %648 = vmatpush1.msra.mxu0 0.0
    %649 = vmatprep.subr.mxu0 0.0
    %650 = vmatpush1.msra.mxu0 0.0
    %651 = vmatprep.subr.mxu0 0.0
    %652 = vmatpush1.msra.mxu0 0.0
    %653 = vmatprep.subr.mxu0 0.0
    %654 = vmatpush1.msra.mxu0 0.0
    %655 = vmatprep.subr.mxu0 0.0
    %656 = vmatpush1.msra.mxu0 0.0
    %657 = vmatprep.subr.mxu0 0.0
    %658 = vmatpush1.msra.mxu0 0.0
    %659 = vmatprep.subr.mxu0 0.0
    %660 = vmatpush1.msra.mxu0 0.0
    %661 = vmatprep.subr.mxu0 0.0
    %662 = vmatpush1.msra.mxu0 0.0
    %663 = vmatprep.mubr.f32.mxu0 0.0
    %664 = vmatmul.mubr.f32.gmra.mrb[0].mxu0 %v597
    %v665 = vpop.f32.mrb[0].mxu0
    %v666 = vadd.f32 %v594, %v665
    %v667 = vpop.f32.mrb[0].mxu0
    %668 = vdwg.mxu0
    %v669 = vadd.f32 %v666, %v501
    %v671 = vcombine.high %v669, %v669
    %v673 = vunpack.c.l.s4 1966171168
    %v674 = vunpack.c.0.s8 %v673
    %v675 = vlaneseq
    %v676 = vshrl.u32 %v675, 7
    %v677 = vsub.s32 %v674, %v676
    %v678 = vrot.slane %v669, %v677
    %v680 = vunpack.c.l.s4 1966171168
    %v681 = vunpack.c.0.s8 %v680
    %v682 = vlaneseq
    %v683 = vshrl.u32 %v682, 7
    %v684 = vsub.s32 %v681, %v683
    %v685 = vrot.slane %v671, %v684
    %v686 = vcombine.high %v678, %v678
    %v687 = vcombine.high %v685, %v685
    %v689 = vunpack.c.l.s4 1966171168
    %v690 = vunpack.c.0.s8 %v689
    %v691 = vlaneseq
    %v692 = vshrl.u32 %v691, 7
    %v693 = vsub.s32 %v690, %v692
    %v694 = vrot.slane %v678, %v693
    %v696 = vunpack.c.l.s4 1966171168
    %v697 = vunpack.c.0.s8 %v696
    %v698 = vlaneseq
    %v699 = vshrl.u32 %v698, 7
    %v700 = vsub.s32 %v697, %v699
    %v701 = vrot.slane %v685, %v700
    %v703 = vunpack.c.l.s4 1966171168
    %v704 = vunpack.c.0.s8 %v703
    %v705 = vlaneseq
    %v706 = vshrl.u32 %v705, 7
    %v707 = vsub.s32 %v704, %v706
    %v708 = vrot.slane %v686, %v707
    %v710 = vunpack.c.l.s4 1966171168
    %v711 = vunpack.c.0.s8 %v710
    %v712 = vlaneseq
    %v713 = vshrl.u32 %v712, 7
    %v714 = vsub.s32 %v711, %v713
    %v715 = vrot.slane %v687, %v714
    %v716 = vcombine.high %v694, %v694
    %v717 = vcombine.high %v701, %v701
    %v718 = vcombine.high %v708, %v708
    %v719 = vcombine.high %v715, %v715
    %v720 = vld [vmem:[%s2] sm:$0x1]
    %v721 = vld [vmem:[%s2 + $0x1] sm:$0x1]
    %v722 = vld [vmem:[%s2 + $0x2] sm:$0x1]
    %v723 = vld [vmem:[%s2 + $0x3] sm:$0x1]
    %v724 = vld [vmem:[%s2 + $0x4] sm:$0x1]
    %v725 = vld [vmem:[%s2 + $0x5] sm:$0x1]
    %v726 = vld [vmem:[%s2 + $0x6] sm:$0x1]
    %v727 = vld [vmem:[%s2 + $0x7] sm:$0x1]
    %v728 = vlaneseq
    %v729 = vshrl.u32 %v728, 7
    %v730 = vlaneseq
    %v731 = vshrl.u32 %v730, 7
    %v732 = vsub.s32 0, %v731
    %v733 = vrot.slane %v720, %v732
    %v734 = vlaneseq
    %v735 = vshrl.u32 %v734, 7
    %v736 = vsub.s32 0, %v735
    %v737 = vrot.slane %v721, %v736
    %v738 = vlaneseq
    %v739 = vshrl.u32 %v738, 7
    %v740 = vsub.s32 0, %v739
    %v741 = vrot.slane %v722, %v740
    %v742 = vlaneseq
    %v743 = vshrl.u32 %v742, 7
    %v744 = vsub.s32 0, %v743
    %v745 = vrot.slane %v723, %v744
    %v746 = vlaneseq
    %v747 = vshrl.u32 %v746, 7
    %v748 = vsub.s32 0, %v747
    %v749 = vrot.slane %v724, %v748
    %v750 = vlaneseq
    %v751 = vshrl.u32 %v750, 7
    %v752 = vsub.s32 0, %v751
    %v753 = vrot.slane %v725, %v752
    %v754 = vlaneseq
    %v755 = vshrl.u32 %v754, 7
    %v756 = vsub.s32 0, %v755
    %v757 = vrot.slane %v726, %v756
    %v758 = vlaneseq
    %v759 = vshrl.u32 %v758, 7
    %v760 = vsub.s32 0, %v759
    %v761 = vrot.slane %v727, %v760
    %vm762 = vcmp.lt.s32.totalorder %v729, %v733
    %vm763 = vcmp.lt.s32.totalorder %v729, %v737
    %vm764 = vcmp.lt.s32.totalorder %v729, %v741
    %vm765 = vcmp.lt.s32.totalorder %v729, %v745
    %vm766 = vcmp.lt.s32.totalorder %v729, %v749
    %vm767 = vcmp.lt.s32.totalorder %v729, %v753
    %vm768 = vcmp.lt.s32.totalorder %v729, %v757
    %vm769 = vcmp.lt.s32.totalorder %v729, %v761
    %v770 = vsel %vm762, 1, 0
    %v771 = vsel %vm763, 1, 0
    %v772 = vsel %vm764, 1, 0
    %v773 = vsel %vm765, 1, 0
    %v774 = vsel %vm766, 1, 0
    %v775 = vsel %vm767, 1, 0
    %v776 = vsel %vm768, 1, 0
    %v777 = vsel %vm769, 1, 0
    %v778 = vcvt.s32.f32 %v770
    %v779 = vcvt.s32.f32 %v771
    %v780 = vcvt.s32.f32 %v772
    %v781 = vcvt.s32.f32 %v773
    %v782 = vcvt.s32.f32 %v774
    %v783 = vcvt.s32.f32 %v775
    %v784 = vcvt.s32.f32 %v776
    %v785 = vcvt.s32.f32 %v777
    %v786 = vlaneseq
    %v787 = vshrl.u32 %v786, 7
    %v788 = vsub.s32 0, %v787
    %v789 = vrot.slane %v694, %v788
    %v790 = vlaneseq
    %v791 = vshrl.u32 %v790, 7
    %v792 = vsub.s32 0, %v791
    %v793 = vrot.slane %v708, %v792
    %v794 = vlaneseq
    %v795 = vshrl.u32 %v794, 7
    %v796 = vsub.s32 0, %v795
    %v797 = vrot.slane %v716, %v796
    %v798 = vlaneseq
    %v799 = vshrl.u32 %v798, 7
    %v800 = vsub.s32 0, %v799
    %v801 = vrot.slane %v718, %v800
    %v802 = vlaneseq
    %v803 = vshrl.u32 %v802, 7
    %v804 = vsub.s32 0, %v803
    %v805 = vrot.slane %v701, %v804
    %v806 = vlaneseq
    %v807 = vshrl.u32 %v806, 7
    %v808 = vsub.s32 0, %v807
    %v809 = vrot.slane %v715, %v808
    %v810 = vlaneseq
    %v811 = vshrl.u32 %v810, 7
    %v812 = vsub.s32 0, %v811
    %v813 = vrot.slane %v717, %v812
    %v814 = vlaneseq
    %v815 = vshrl.u32 %v814, 7
    %v816 = vsub.s32 0, %v815
    %v817 = vrot.slane %v719, %v816
    %v826 = vmul.f32 %v359, %v789
    %v827 = vmul.f32 %v360, %v793
    %v828 = vmul.f32 %v361, %v797
    %v829 = vmul.f32 %v362, %v801
    %v830 = vmul.f32 %v363, %v805
    %v831 = vmul.f32 %v364, %v809
    %v832 = vmul.f32 %v365, %v813
    %v833 = vmul.f32 %v366, %v817
    %v834 = vsel %vm82, %v826, 0.0
    %835 = vadd.xlane.f32.xlu0 %v834
    %v836 = vpop.xlane.xlu0 %835
    %v837 = vsel %vm82, %v827, 0.0
    %838 = vadd.xlane.f32.xlu0 %v837
    %v839 = vpop.xlane.xlu0 %838
    %v840 = vsel %vm82, %v828, 0.0
    %841 = vadd.xlane.f32.xlu0 %v840
    %v842 = vpop.xlane.xlu0 %841
    %v843 = vsel %vm82, %v829, 0.0
    %844 = vadd.xlane.f32.xlu0 %v843
    %v845 = vpop.xlane.xlu0 %844
    %v846 = vsel %vm82, %v830, 0.0
    %847 = vadd.xlane.f32.xlu0 %v846
    %v848 = vpop.xlane.xlu0 %847
    %v849 = vsel %vm82, %v831, 0.0
    %850 = vadd.xlane.f32.xlu0 %v849
    %v851 = vpop.xlane.xlu0 %850
    %v852 = vsel %vm82, %v832, 0.0
    %853 = vadd.xlane.f32.xlu0 %v852
    %v854 = vpop.xlane.xlu0 %853
    %v855 = vsel %vm82, %v833, 0.0
    %856 = vadd.xlane.f32.xlu0 %v855
    %v857 = vpop.xlane.xlu0 %856
    %v858 = vmul.f32 %v836, 0.17677669
    %v859 = vmul.f32 %v839, 0.17677669
    %v860 = vmul.f32 %v842, 0.17677669
    %v861 = vmul.f32 %v845, 0.17677669
    %v862 = vmul.f32 %v848, 0.17677669
    %v863 = vmul.f32 %v851, 0.17677669
    %v864 = vmul.f32 %v854, 0.17677669
    %v865 = vmul.f32 %v857, 0.17677669
    %v866 = vxor.u32 %v858, 2147483648
    %v867 = vxor.u32 %v859, 2147483648
    %v868 = vxor.u32 %v860, 2147483648
    %v869 = vxor.u32 %v861, 2147483648
    %v870 = vxor.u32 %v862, 2147483648
    %v871 = vxor.u32 %v863, 2147483648
    %v872 = vxor.u32 %v864, 2147483648
    %v873 = vxor.u32 %v865, 2147483648
    %v874 = vmul.f32 %v866, 1.442695
    %v875 = vpow.pop %v874
    %v876 = vmul.f32 %v867, 1.442695
    %v877 = vpow.pop %v876
    %v878 = vmul.f32 %v868, 1.442695
    %v879 = vpow.pop %v878
    %v880 = vmul.f32 %v869, 1.442695
    %v881 = vpow.pop %v880
    %v882 = vmul.f32 %v870, 1.442695
    %v883 = vpow.pop %v882
    %v884 = vmul.f32 %v871, 1.442695
    %v885 = vpow.pop %v884
    %v886 = vmul.f32 %v872, 1.442695
    %v887 = vpow.pop %v886
    %v888 = vmul.f32 %v873, 1.442695
    %v889 = vpow.pop %v888
    %v890 = vadd.f32 %v875, 1.0
    %v891 = vadd.f32 %v877, 1.0
    %v892 = vadd.f32 %v879, 1.0
    %v893 = vadd.f32 %v881, 1.0
    %v894 = vadd.f32 %v883, 1.0
    %v895 = vadd.f32 %v885, 1.0
    %v896 = vadd.f32 %v887, 1.0
    %v897 = vadd.f32 %v889, 1.0
    %v898 = vrcp.pop %v890
    %v899 = vmul.f32 1.0, %v898
    %v900 = vrcp.pop %v891
    %v901 = vmul.f32 1.0, %v900
    %v902 = vrcp.pop %v892
    %v903 = vmul.f32 1.0, %v902
    %v904 = vrcp.pop %v893
    %v905 = vmul.f32 1.0, %v904
    %v906 = vrcp.pop %v894
    %v907 = vmul.f32 1.0, %v906
    %v908 = vrcp.pop %v895
    %v909 = vmul.f32 1.0, %v908
    %v910 = vrcp.pop %v896
    %v911 = vmul.f32 1.0, %v910
    %v912 = vrcp.pop %v897
    %v913 = vmul.f32 1.0, %v912
    %v914 = vmul.f32 %v899, %v778
    %v915 = vmul.f32 %v901, %v779
    %v916 = vmul.f32 %v903, %v780
    %v917 = vmul.f32 %v905, %v781
    %v918 = vmul.f32 %v907, %v782
    %v919 = vmul.f32 %v909, %v783
    %v920 = vmul.f32 %v911, %v784
    %v921 = vmul.f32 %v913, %v785
    %923 = vset.pattern.permute.xlu0 0
    %924 = vperm.xlu0 %923, %v914
    %v925 = vpop.permute.xlu0 %924
    %928 = vset.pattern.permute.xlu0 0
    %929 = vperm.xlu0 %928, %v915
    %v930 = vpop.permute.xlu0 %929
    %933 = vset.pattern.permute.xlu0 0
    %934 = vperm.xlu0 %933, %v916
    %v935 = vpop.permute.xlu0 %934
    %938 = vset.pattern.permute.xlu0 0
    %939 = vperm.xlu0 %938, %v917
    %v940 = vpop.permute.xlu0 %939
    %943 = vset.pattern.permute.xlu0 0
    %944 = vperm.xlu0 %943, %v918
    %v945 = vpop.permute.xlu0 %944
    %948 = vset.pattern.permute.xlu0 0
    %949 = vperm.xlu0 %948, %v919
    %v950 = vpop.permute.xlu0 %949
    %953 = vset.pattern.permute.xlu0 0
    %954 = vperm.xlu0 %953, %v920
    %v955 = vpop.permute.xlu0 %954
    %958 = vset.pattern.permute.xlu0 0
    %959 = vperm.xlu0 %958, %v921
    %v960 = vpop.permute.xlu0 %959
    %v962 = vmul.f32 %v925, %v359
    %v963 = vmul.f32 %v930, %v360
    %v964 = vmul.f32 %v935, %v361
    %v965 = vmul.f32 %v940, %v362
    %v966 = vmul.f32 %v945, %v363
    %v967 = vmul.f32 %v950, %v364
    %v968 = vmul.f32 %v955, %v365
    %v969 = vmul.f32 %v960, %v366
    %971 = vset.pattern.permute.xlu0 0
    %972 = vperm.xlu0 %971, %v778
    %v973 = vpop.permute.xlu0 %972
    %976 = vset.pattern.permute.xlu0 0
    %977 = vperm.xlu0 %976, %v779
    %v978 = vpop.permute.xlu0 %977
    %981 = vset.pattern.permute.xlu0 0
    %982 = vperm.xlu0 %981, %v780
    %v983 = vpop.permute.xlu0 %982
    %986 = vset.pattern.permute.xlu0 0
    %987 = vperm.xlu0 %986, %v781
    %v988 = vpop.permute.xlu0 %987
    %991 = vset.pattern.permute.xlu0 0
    %992 = vperm.xlu0 %991, %v782
    %v993 = vpop.permute.xlu0 %992
    %996 = vset.pattern.permute.xlu0 0
    %997 = vperm.xlu0 %996, %v783
    %v998 = vpop.permute.xlu0 %997
    %1001 = vset.pattern.permute.xlu0 0
    %1002 = vperm.xlu0 %1001, %v784
    %v1003 = vpop.permute.xlu0 %1002
    %1006 = vset.pattern.permute.xlu0 0
    %1007 = vperm.xlu0 %1006, %v785
    %v1008 = vpop.permute.xlu0 %1007
    %v1010 = vmul.f32 %v789, %v973
    %v1011 = vmul.f32 %v793, %v978
    %v1012 = vmul.f32 %v797, %v983
    %v1013 = vmul.f32 %v801, %v988
    %v1014 = vmul.f32 %v805, %v993
    %v1015 = vmul.f32 %v809, %v998
    %v1016 = vmul.f32 %v813, %v1003
    %v1017 = vmul.f32 %v817, %v1008
    %v1018 = vld [vmem:[%s15] sm:$0xff]
    %v1019 = vld [vmem:[%s15 + $0x8] sm:$0xff]
    %v1020 = vld [vmem:[%s15 + $0x10] sm:$0xff]
    %v1021 = vld [vmem:[%s15 + $0x18] sm:$0xff]
    %v1022 = vld [vmem:[%s16] sm:$0x1]
    %v1024 = vlaneseq
    %v1025 = vshrl.u32 %v1024, 7
    %v1026 = vsub.s32 0, %v1025
    %v1027 = vrot.slane %v1022, %v1026
    %v1030 = vsel %vm82, %v962, 0
    %v1033 = vsel %vm82, %v963, 0
    %v1036 = vsel %vm82, %v964, 0
    %v1039 = vsel %vm82, %v965, 0
    %v1042 = vsel %vm82, %v966, 0
    %v1045 = vsel %vm82, %v967, 0
    %v1048 = vsel %vm82, %v968, 0
    %v1051 = vsel %vm82, %v969, 0
    %1053 = vmatprep.subr.mxu0 0.0
    %1054 = vmatpush1.msra.mxu0 %v1018
    %1055 = vmatprep.subr.mxu0 0.0
    %1056 = vmatpush1.msra.mxu0 %v1019
    %1057 = vmatprep.subr.mxu0 0.0
    %1058 = vmatpush1.msra.mxu0 %v1020
    %1059 = vmatprep.subr.mxu0 0.0
    %1060 = vmatpush1.msra.mxu0 %v1021
    %1061 = vmatprep.subr.mxu0 0.0
    %1062 = vmatpush1.msra.mxu0 0.0
    %1063 = vmatprep.subr.mxu0 0.0
    %1064 = vmatpush1.msra.mxu0 0.0
    %1065 = vmatprep.subr.mxu0 0.0
    %1066 = vmatpush1.msra.mxu0 0.0
    %1067 = vmatprep.subr.mxu0 0.0
    %1068 = vmatpush1.msra.mxu0 0.0
    %1069 = vmatprep.subr.mxu0 0.0
    %1070 = vmatpush1.msra.mxu0 0.0
    %1071 = vmatprep.subr.mxu0 0.0
    %1072 = vmatpush1.msra.mxu0 0.0
    %1073 = vmatprep.subr.mxu0 0.0
    %1074 = vmatpush1.msra.mxu0 0.0
    %1075 = vmatprep.subr.mxu0 0.0
    %1076 = vmatpush1.msra.mxu0 0.0
    %1077 = vmatprep.subr.mxu0 0.0
    %1078 = vmatpush1.msra.mxu0 0.0
    %1079 = vmatprep.subr.mxu0 0.0
    %1080 = vmatpush1.msra.mxu0 0.0
    %1081 = vmatprep.subr.mxu0 0.0
    %1082 = vmatpush1.msra.mxu0 0.0
    %1083 = vmatprep.subr.mxu0 0.0
    %1084 = vmatpush1.msra.mxu0 0.0
    %1085 = vmatprep.subr.mxu0 0.0
    %1086 = vmatpush1.msra.mxu0 0.0
    %1087 = vmatprep.subr.mxu0 0.0
    %1088 = vmatpush1.msra.mxu0 0.0
    %1089 = vmatprep.subr.mxu0 0.0
    %1090 = vmatpush1.msra.mxu0 0.0
    %1091 = vmatprep.subr.mxu0 0.0
    %1092 = vmatpush1.msra.mxu0 0.0
    %1093 = vmatprep.subr.mxu0 0.0
    %1094 = vmatpush1.msra.mxu0 0.0
    %1095 = vmatprep.subr.mxu0 0.0
    %1096 = vmatpush1.msra.mxu0 0.0
    %1097 = vmatprep.subr.mxu0 0.0
    %1098 = vmatpush1.msra.mxu0 0.0
    %1099 = vmatprep.subr.mxu0 0.0
    %1100 = vmatpush1.msra.mxu0 0.0
    %1101 = vmatprep.subr.mxu0 0.0
    %1102 = vmatpush1.msra.mxu0 0.0
    %1103 = vmatprep.subr.mxu0 0.0
    %1104 = vmatpush1.msra.mxu0 0.0
    %1105 = vmatprep.subr.mxu0 0.0
    %1106 = vmatpush1.msra.mxu0 0.0
    %1107 = vmatprep.subr.mxu0 0.0
    %1108 = vmatpush1.msra.mxu0 0.0
    %1109 = vmatprep.subr.mxu0 0.0
    %1110 = vmatpush1.msra.mxu0 0.0
    %1111 = vmatprep.subr.mxu0 0.0
    %1112 = vmatpush1.msra.mxu0 0.0
    %1113 = vmatprep.subr.mxu0 0.0
    %1114 = vmatpush1.msra.mxu0 0.0
    %1115 = vmatprep.subr.mxu0 0.0
    %1116 = vmatpush1.msra.mxu0 0.0
    %1117 = vmatprep.mubr.f32.mxu0 0.0
    %1118 = vmatmul.mubr.f32.gmra.mrb[0].mxu0 %v1030
    %v1119 = vpop.f32.mrb[0].mxu0
    %v1120 = vadd.f32 %v1027, %v1119
    %v1121 = vpop.f32.mrb[0].mxu0
    %1122 = vmatprep.mubr.f32.mxu0 0.0
    %1123 = vmatmul.mubr.f32.gmra.mrb[0].mxu0 %v1033
    %v1124 = vpop.f32.mrb[0].mxu0
    %v1125 = vadd.f32 %v1027, %v1124
    %v1126 = vpop.f32.mrb[0].mxu0
    %1127 = vmatprep.mubr.f32.mxu0 0.0
    %1128 = vmatmul.mubr.f32.gmra.mrb[0].mxu0 %v1036
    %v1129 = vpop.f32.mrb[0].mxu0
    %v1130 = vadd.f32 %v1027, %v1129
    %v1131 = vpop.f32.mrb[0].mxu0
    %1132 = vmatprep.mubr.f32.mxu0 0.0
    %1133 = vmatmul.mubr.f32.gmra.mrb[0].mxu0 %v1039
    %v1134 = vpop.f32.mrb[0].mxu0
    %v1135 = vadd.f32 %v1027, %v1134
    %v1136 = vpop.f32.mrb[0].mxu0
    %1137 = vmatprep.mubr.f32.mxu0 0.0
    %1138 = vmatmul.mubr.f32.gmra.mrb[0].mxu0 %v1042
    %v1139 = vpop.f32.mrb[0].mxu0
    %v1140 = vadd.f32 %v1027, %v1139
    %v1141 = vpop.f32.mrb[0].mxu0
    %1142 = vmatprep.mubr.f32.mxu0 0.0
    %1143 = vmatmul.mubr.f32.gmra.mrb[0].mxu0 %v1045
    %v1144 = vpop.f32.mrb[0].mxu0
    %v1145 = vadd.f32 %v1027, %v1144
    %v1146 = vpop.f32.mrb[0].mxu0
    %1147 = vmatprep.mubr.f32.mxu0 0.0
    %1148 = vmatmul.mubr.f32.gmra.mrb[0].mxu0 %v1048
    %v1149 = vpop.f32.mrb[0].mxu0
    %v1150 = vadd.f32 %v1027, %v1149
    %v1151 = vpop.f32.mrb[0].mxu0
    %1152 = vmatprep.mubr.f32.mxu0 0.0
    %1153 = vmatmul.mubr.f32.gmra.mrb[0].mxu0 %v1051
    %v1154 = vpop.f32.mrb[0].mxu0
    %v1155 = vadd.f32 %v1027, %v1154
    %v1156 = vpop.f32.mrb[0].mxu0
    %1157 = vdwg.mxu0
    %v1158 = vtanh.pop %v1120
    %v1159 = vtanh.pop %v1125
    %v1160 = vtanh.pop %v1130
    %v1161 = vtanh.pop %v1135
    %v1162 = vtanh.pop %v1140
    %v1163 = vtanh.pop %v1145
    %v1164 = vtanh.pop %v1150
    %v1165 = vtanh.pop %v1155
    %v1166 = vmul.f32 %v962, %v1158
    %v1167 = vmul.f32 %v963, %v1159
    %v1168 = vmul.f32 %v964, %v1160
    %v1169 = vmul.f32 %v965, %v1161
    %v1170 = vmul.f32 %v966, %v1162
    %v1171 = vmul.f32 %v967, %v1163
    %v1172 = vmul.f32 %v968, %v1164
    %v1173 = vmul.f32 %v969, %v1165
    %v1174 = vadd.f32 %v1166, %v1010
    %v1175 = vadd.f32 %v1167, %v1011
    %v1176 = vadd.f32 %v1168, %v1012
    %v1177 = vadd.f32 %v1169, %v1013
    %v1178 = vadd.f32 %v1170, %v1014
    %v1179 = vadd.f32 %v1171, %v1015
    %v1180 = vadd.f32 %v1172, %v1016
    %v1181 = vadd.f32 %v1173, %v1017
    %v1182 = vld [vmem:[%s17] sm:$0xff]
    %v1183 = vld [vmem:[%s17 + $0x8] sm:$0xff]
    %v1184 = vld [vmem:[%s17 + $0x10] sm:$0xff]
    %v1185 = vld [vmem:[%s17 + $0x18] sm:$0xff]
    %v1186 = vld [vmem:[%s18] sm:$0x1]
    %v1188 = vlaneseq
    %v1189 = vshrl.u32 %v1188, 7
    %v1190 = vsub.s32 0, %v1189
    %v1191 = vrot.slane %v1186, %v1190
    %v1194 = vsel %vm82, %v1174, 0
    %v1197 = vsel %vm82, %v1175, 0
    %v1200 = vsel %vm82, %v1176, 0
    %v1203 = vsel %vm82, %v1177, 0
    %v1206 = vsel %vm82, %v1178, 0
    %v1209 = vsel %vm82, %v1179, 0
    %v1212 = vsel %vm82, %v1180, 0
    %v1215 = vsel %vm82, %v1181, 0
    %1217 = vmatprep.subr.mxu0 0.0
    %1218 = vmatpush1.msra.mxu0 %v1182
    %1219 = vmatprep.subr.mxu0 0.0
    %1220 = vmatpush1.msra.mxu0 %v1183
    %1221 = vmatprep.subr.mxu0 0.0
    %1222 = vmatpush1.msra.mxu0 %v1184
    %1223 = vmatprep.subr.mxu0 0.0
    %1224 = vmatpush1.msra.mxu0 %v1185
    %1225 = vmatprep.subr.mxu0 0.0
    %1226 = vmatpush1.msra.mxu0 0.0
    %1227 = vmatprep.subr.mxu0 0.0
    %1228 = vmatpush1.msra.mxu0 0.0
    %1229 = vmatprep.subr.mxu0 0.0
    %1230 = vmatpush1.msra.mxu0 0.0
    %1231 = vmatprep.subr.mxu0 0.0
    %1232 = vmatpush1.msra.mxu0 0.0
    %1233 = vmatprep.subr.mxu0 0.0
    %1234 = vmatpush1.msra.mxu0 0.0
    %1235 = vmatprep.subr.mxu0 0.0
    %1236 = vmatpush1.msra.mxu0 0.0
    %1237 = vmatprep.subr.mxu0 0.0
    %1238 = vmatpush1.msra.mxu0 0.0
    %1239 = vmatprep.subr.mxu0 0.0
    %1240 = vmatpush1.msra.mxu0 0.0
    %1241 = vmatprep.subr.mxu0 0.0
    %1242 = vmatpush1.msra.mxu0 0.0
    %1243 = vmatprep.subr.mxu0 0.0
    %1244 = vmatpush1.msra.mxu0 0.0
    %1245 = vmatprep.subr.mxu0 0.0
    %1246 = vmatpush1.msra.mxu0 0.0
    %1247 = vmatprep.subr.mxu0 0.0
    %1248 = vmatpush1.msra.mxu0 0.0
    %1249 = vmatprep.subr.mxu0 0.0
    %1250 = vmatpush1.msra.mxu0 0.0
    %1251 = vmatprep.subr.mxu0 0.0
    %1252 = vmatpush1.msra.mxu0 0.0
    %1253 = vmatprep.subr.mxu0 0.0
    %1254 = vmatpush1.msra.mxu0 0.0
    %1255 = vmatprep.subr.mxu0 0.0
    %1256 = vmatpush1.msra.mxu0 0.0
    %1257 = vmatprep.subr.mxu0 0.0
    %1258 = vmatpush1.msra.mxu0 0.0
    %1259 = vmatprep.subr.mxu0 0.0
    %1260 = vmatpush1.msra.mxu0 0.0
    %1261 = vmatprep.subr.mxu0 0.0
    %1262 = vmatpush1.msra.mxu0 0.0
    %1263 = vmatprep.subr.mxu0 0.0
    %1264 = vmatpush1.msra.mxu0 0.0
    %1265 = vmatprep.subr.mxu0 0.0
    %1266 = vmatpush1.msra.mxu0 0.0
    %1267 = vmatprep.subr.mxu0 0.0
    %1268 = vmatpush1.msra.mxu0 0.0
    %1269 = vmatprep.subr.mxu0 0.0
    %1270 = vmatpush1.msra.mxu0 0.0
    %1271 = vmatprep.subr.mxu0 0.0
    %1272 = vmatpush1.msra.mxu0 0.0
    %1273 = vmatprep.subr.mxu0 0.0
    %1274 = vmatpush1.msra.mxu0 0.0
    %1275 = vmatprep.subr.mxu0 0.0
    %1276 = vmatpush1.msra.mxu0 0.0
    %1277 = vmatprep.subr.mxu0 0.0
    %1278 = vmatpush1.msra.mxu0 0.0
    %1279 = vmatprep.subr.mxu0 0.0
    %1280 = vmatpush1.msra.mxu0 0.0
    %1281 = vmatprep.mubr.f32.mxu0 0.0
    %1282 = vmatmul.mubr.f32.gmra.mrb[0].mxu0 %v1194
    %v1283 = vpop.f32.mrb[0].mxu0
    %v1284 = vadd.f32 %v1191, %v1283
    %v1285 = vpop.f32.mrb[0].mxu0
    %1286 = vmatprep.mubr.f32.mxu0 0.0
    %1287 = vmatmul.mubr.f32.gmra.mrb[0].mxu0 %v1197
    %v1288 = vpop.f32.mrb[0].mxu0
    %v1289 = vadd.f32 %v1191, %v1288
    %v1290 = vpop.f32.mrb[0].mxu0
    %1291 = vmatprep.mubr.f32.mxu0 0.0
    %1292 = vmatmul.mubr.f32.gmra.mrb[0].mxu0 %v1200
    %v1293 = vpop.f32.mrb[0].mxu0
    %v1294 = vadd.f32 %v1191, %v1293
    %v1295 = vpop.f32.mrb[0].mxu0
    %1296 = vmatprep.mubr.f32.mxu0 0.0
    %1297 = vmatmul.mubr.f32.gmra.mrb[0].mxu0 %v1203
    %v1298 = vpop.f32.mrb[0].mxu0
    %v1299 = vadd.f32 %v1191, %v1298
    %v1300 = vpop.f32.mrb[0].mxu0
    %1301 = vmatprep.mubr.f32.mxu0 0.0
    %1302 = vmatmul.mubr.f32.gmra.mrb[0].mxu0 %v1206
    %v1303 = vpop.f32.mrb[0].mxu0
    %v1304 = vadd.f32 %v1191, %v1303
    %v1305 = vpop.f32.mrb[0].mxu0
    %1306 = vmatprep.mubr.f32.mxu0 0.0
    %1307 = vmatmul.mubr.f32.gmra.mrb[0].mxu0 %v1209
    %v1308 = vpop.f32.mrb[0].mxu0
    %v1309 = vadd.f32 %v1191, %v1308
    %v1310 = vpop.f32.mrb[0].mxu0
    %1311 = vmatprep.mubr.f32.mxu0 0.0
    %1312 = vmatmul.mubr.f32.gmra.mrb[0].mxu0 %v1212
    %v1313 = vpop.f32.mrb[0].mxu0
    %v1314 = vadd.f32 %v1191, %v1313
    %v1315 = vpop.f32.mrb[0].mxu0
    %1316 = vmatprep.mubr.f32.mxu0 0.0
    %1317 = vmatmul.mubr.f32.gmra.mrb[0].mxu0 %v1215
    %v1318 = vpop.f32.mrb[0].mxu0
    %v1319 = vadd.f32 %v1191, %v1318
    %v1320 = vpop.f32.mrb[0].mxu0
    %1321 = vdwg.mxu0
    %v1322 = vmax.f32 %v1284, 0.0
    %v1323 = vmax.f32 %v1289, 0.0
    %v1324 = vmax.f32 %v1294, 0.0
    %v1325 = vmax.f32 %v1299, 0.0
    %v1326 = vmax.f32 %v1304, 0.0
    %v1327 = vmax.f32 %v1309, 0.0
    %v1328 = vmax.f32 %v1314, 0.0
    %v1329 = vmax.f32 %v1319, 0.0
    %1330 = vst.msk [vmem:[#allocation2] sm:$0xff] %vm82, %v1322
    %1331 = vst.msk [vmem:[#allocation2 + $0x8] sm:$0xff] %vm82, %v1323
    %1332 = vst.msk [vmem:[#allocation2 + $0x10] sm:$0xff] %vm82, %v1324
    %1333 = vst.msk [vmem:[#allocation2 + $0x18] sm:$0xff] %vm82, %v1325
    %1334 = vst.msk [vmem:[#allocation2 + $0x20] sm:$0xff] %vm82, %v1326
    %1335 = vst.msk [vmem:[#allocation2 + $0x28] sm:$0xff] %vm82, %v1327
    %1336 = vst.msk [vmem:[#allocation2 + $0x30] sm:$0xff] %vm82, %v1328
    %1337 = vst.msk [vmem:[#allocation2 + $0x38] sm:$0xff] %vm82, %v1329
    // Predicated region
    $region78: #{tpu_custom_call.1} parent=1 // pred_check
      _
    $region79: #{tpu_custom_call.1} parent=1 // pred_check_branch
      %1339 = sbr.rel (0) target = $region81
    $region80: #{tpu_custom_call.1} parent=1 // pred_region
      %s1341 = ssub.s32 1024, 1024
      %1342 = vsyncadd [#allocation3], %s1341
      %s1343 = sshll.u32 [#allocation2], 4
      %s1344 = int_to_ptr.vmem [resolvable:$true] %s1343
      %1349 = dma.vmem_to_hbm [thread:$0]  %s1344, 1024, %s19, [#allocation3], 128, 128, 8
    $region81: #{tpu_custom_call.1} parent=1 // pred_fallthru
      _
    // Predicated region
    $region82: #{tpu_custom_call.1} parent=1 // pred_check
      _
    $region83: #{tpu_custom_call.1} parent=1 // pred_check_branch
      %1351 = sbr.rel (0) target = $region85
    $region84: #{tpu_custom_call.1} parent=1 // pred_region
      %1352 = dma.done [#allocation3], 1024
    $region85: #{tpu_custom_call.1} parent=1 // pred_fallthru
      _
    %1353 = vsyncpa [#allocation3], 1

</llo_original>
